<compile_context>
chip_gen: v7x
topology: tpu7x:2x2x1
jax: 0.10.0
libtpu: 0.0.40
codegen_flags: <defaults>
</compile_context>

<pallas_src>
import functools

import jax
import jax.numpy as jnp
from jax.experimental import pallas as pl
from jax.experimental.pallas import tpu as pltpu


def _mha_map_kernel(q_ref, k_ref, wq_ref, bq_ref, wk_ref, bk_ref, s_ref,
                    hmask_ref, o_ref, *, num_heads, q_tile):
    # q_ref:     (1, q_tile, Dq)       queries for this (batch, q-tile)
    # k_ref:     (1, Dq, HW)           channels-first flattened feature map
    # wq_ref:    (Dq, hidden)          q weight (transposed), scale folded in
    # bq_ref:    (1, hidden)           q bias, scale folded in
    # wk_ref:    (hidden, Dq)          k weight (1x1 conv)
    # bk_ref:    (hidden, 1)           k bias, broadcast along HW (lanes)
    # s_ref:     (q_tile*nh, q_tile)   one-hot row-replication matrix
    # hmask_ref: (q_tile*nh, hidden)   per-row head column mask
    # o_ref:     (1, q_tile*nh, HW)    softmaxed attention maps
    f32 = jnp.float32

    # Query projection (scale already folded into wq/bq): (q_tile, hidden).
    qp = jnp.dot(q_ref[0], wq_ref[...],
                 preferred_element_type=f32) + bq_ref[...]
    # Key projection, channels-first: (hidden, HW) -- lane-dense in HW.
    kp = jnp.dot(wk_ref[...], k_ref[0],
                 preferred_element_type=f32) + bk_ref[...]

    # Block-diagonal queries: row r = (query r//nh, head r%nh) keeps only its
    # own head's hidden columns.  S replicates query rows (one-hot, K=q_tile
    # matmul); the mask zeroes the other heads' columns.  No sub-tile slices.
    qp_bd = jnp.dot(s_ref[...], qp,
                    preferred_element_type=f32) * hmask_ref[...]

    # ONE fused MXU matmul for all heads: (q_tile*nh, HW) logits, already in
    # torch flatten(2) (query-major, head-minor) order.
    w = jnp.dot(qp_bd, kp, preferred_element_type=f32)

    # TODO(synk): mask path (masked_fill with -inf before softmax) and dropout
    # are not implemented (forward here assumes mask=None, dropout p=0).

    # Joint softmax per query over its (num_heads * HW) logits, done on the
    # aligned (num_heads, HW) row block of each query (num_heads == 8 keeps
    # every slice on a sublane-tile boundary).  All 2D ops, no reshapes.
    for qi in range(q_tile):
        lo = qi * num_heads
        blk = w[lo:lo + num_heads, :]                               # (nh, HW)
        m = jnp.max(jnp.max(blk, axis=1, keepdims=True),
                    axis=0, keepdims=True)                          # (1, 1)
        e = jnp.exp(blk - m)
        s = jnp.sum(jnp.sum(e, axis=1, keepdims=True),
                    axis=0, keepdims=True)                          # (1, 1)
        r = pl.reciprocal(s, approx=True)                           # EUP vrcp
        r = r * (2.0 - s * r)              # one Newton step -> ~f32 accuracy
        o_ref[0, lo:lo + num_heads, :] = (e * r).astype(o_ref.dtype)


def mh_attention_map(q, k, wq, bq, wk, bk, num_heads, *,
                     compute_dtype=jnp.float32):
    B, Q, Dq = q.shape
    _, C, H, W = k.shape
    assert C == Dq
    hidden = wq.shape[0]
    head_dim = hidden // num_heads
    normalize_fact = float(hidden / num_heads) ** (-0.5)
    HW = H * W

    # Free reshape: NCHW -> (B, Dq, HW).  No HBM transpose of k.
    k_flat = k.reshape(B, Dq, HW).astype(compute_dtype)
    q_c = q.astype(compute_dtype)
    # Fold the attention scale into the query projection parameters.
    wq_t = (wq.T * normalize_fact).astype(compute_dtype)          # (Dq, hidden)
    bq2 = (bq * normalize_fact).reshape(1, hidden).astype(jnp.float32)
    wk_c = wk.astype(compute_dtype)                               # (hidden, Dq)
    bk2 = bk.reshape(hidden, 1).astype(jnp.float32)               # bcast over HW

    # v7x has two TensorCores: with B == 1 split the query axis so both get
    # work.  The q-tile must stay a multiple of 8 for the (8,128) block rule.
    q_tiles = 2 if (B == 1 and Q % 16 == 0) else 1
    tq = Q // q_tiles
    rows = tq * num_heads

    # Structural constants, built once at trace time (hoisted out of kernel).
    r_idx = jnp.arange(rows)
    S = (r_idx[:, None] // num_heads ==
         jnp.arange(tq)[None, :]).astype(jnp.float32)             # (rows, tq)
    hmask = ((r_idx[:, None] % num_heads) ==
             (jnp.arange(hidden)[None, :] // head_dim)
             ).astype(jnp.float32)                                # (rows, hidden)

    kernel = functools.partial(_mha_map_kernel,
                               num_heads=num_heads, q_tile=tq)

    out = pl.pallas_call(
        kernel,
        out_shape=jax.ShapeDtypeStruct((B, Q * num_heads, HW), jnp.float32),
        grid_spec=pltpu.PrefetchScalarGridSpec(
            num_scalar_prefetch=0,
            grid=(B, q_tiles),
            in_specs=[
                pl.BlockSpec((1, tq, Dq), lambda b, qi: (b, qi, 0)),
                pl.BlockSpec((1, Dq, HW), lambda b, qi: (b, 0, 0)),
                pl.BlockSpec((Dq, hidden), lambda b, qi: (0, 0)),
                pl.BlockSpec((1, hidden), lambda b, qi: (0, 0)),
                pl.BlockSpec((hidden, Dq), lambda b, qi: (0, 0)),
                pl.BlockSpec((hidden, 1), lambda b, qi: (0, 0)),
                pl.BlockSpec((rows, tq), lambda b, qi: (0, 0)),
                pl.BlockSpec((rows, hidden), lambda b, qi: (0, 0)),
            ],
            out_specs=pl.BlockSpec((1, rows, HW), lambda b, qi: (b, qi, 0)),
        ),
        compiler_params=pltpu.CompilerParams(
            dimension_semantics=("parallel", "parallel")),
    )(q_c, k_flat, wq_t, bq2, wk_c, bk2, S, hmask)

    # Contiguous (free) reshape to the torch view (B, Q, nh, H, W).
    return out.reshape(B, Q, num_heads, H, W)


def reference(q, k, wq, bq, wk, bk, num_heads):
    """Pure-JAX reference mirroring the PyTorch forward (mask=None, no dropout)."""
    B, Q, _ = q.shape
    _, _, H, W = k.shape
    hidden = wq.shape[0]
    hd = hidden // num_heads
    norm = float(hidden / num_heads) ** (-0.5)
    qp = q @ wq.T + bq
    kp = jnp.einsum("bchw,oc->bohw", k, wk) + bk[None, :, None, None]
    qh = qp.reshape(B, Q, num_heads, hd)
    kh = kp.reshape(B, num_heads, hd, H, W)
    w = jnp.einsum("bqnc,bnchw->bqnhw", qh * norm, kh)
    wf = jax.nn.softmax(w.reshape(B, Q, -1), axis=-1)
    return wf.reshape(w.shape)


if __name__ == "__main__":
    # Small shapes consistent with the module.
    B, Q = 2, 8            # batch, number of queries
    query_dim = 32         # input feature channels
    hidden_dim = 32
    num_heads = 8
    H = W = 16

    key = jax.random.PRNGKey(0)
    k_q, k_k, k_wq, k_wk = jax.random.split(key, 4)

    q = jax.random.normal(k_q, (B, Q, query_dim), dtype=jnp.float32)
    k = jax.random.normal(k_k, (B, query_dim, H, W), dtype=jnp.float32)

    # Deterministic parameter init mirroring nn.init.xavier_uniform_ / zeros_.
    bound = (6.0 / (query_dim + hidden_dim)) ** 0.5
    wq = jax.random.uniform(k_wq, (hidden_dim, query_dim), jnp.float32,
                            minval=-bound, maxval=bound)
    wk = jax.random.uniform(k_wk, (hidden_dim, query_dim), jnp.float32,
                            minval=-bound, maxval=bound)
    bq = jnp.zeros((hidden_dim,), jnp.float32)
    bk = jnp.zeros((hidden_dim,), jnp.float32)

    out = mh_attention_map(q, k, wq, bq, wk, bk, num_heads)
    out = jax.block_until_ready(out)

    ref = reference(q, k, wq, bq, wk, bk, num_heads)
    assert out.shape == (B, Q, num_heads, H, W), out.shape
    assert jnp.allclose(out, ref, rtol=1e-5, atol=1e-6), "mismatch vs reference"

    print("KERNEL_OK")
</pallas_src>

<mosaic_0001>
module attributes {stable_mosaic.version = 11 : i64} {
  func.func @_mha_map_kernel(%arg0: i32, %arg1: i32, %arg2: memref<1x8x32xf32, #tpu.memory_space<vmem>>, %arg3: memref<1x32x256xf32, #tpu.memory_space<vmem>>, %arg4: memref<32x32xf32, #tpu.memory_space<vmem>>, %arg5: memref<1x32xf32, #tpu.memory_space<vmem>>, %arg6: memref<32x32xf32, #tpu.memory_space<vmem>>, %arg7: memref<32x1xf32, #tpu.memory_space<vmem>>, %arg8: memref<64x8xf32, #tpu.memory_space<vmem>>, %arg9: memref<64x32xf32, #tpu.memory_space<vmem>>, %arg10: memref<1x64x256xf32, #tpu.memory_space<vmem>>) attributes {dimension_semantics = [#tpu.dimension_semantics<parallel>, #tpu.dimension_semantics<parallel>], iteration_bounds = array<i64: 2, 1>, scalar_prefetch = 0 : i64, scratch_operands = 0 : i64, tpu.core_type = #tpu.core_type<tc>, window_params = [{transform_indices = @transform_0, window_bounds = array<i64: 1, 8, 32>}, {transform_indices = @transform_1, window_bounds = array<i64: 1, 32, 256>}, {pipeline_mode = #tpu.pipeline_mode<synchronous>, transform_indices = @transform_2, window_bounds = array<i64: 32, 32>}, {pipeline_mode = #tpu.pipeline_mode<synchronous>, transform_indices = @transform_3, window_bounds = array<i64: 1, 32>}, {pipeline_mode = #tpu.pipeline_mode<synchronous>, transform_indices = @transform_4, window_bounds = array<i64: 32, 32>}, {pipeline_mode = #tpu.pipeline_mode<synchronous>, transform_indices = @transform_5, window_bounds = array<i64: 32, 1>}, {pipeline_mode = #tpu.pipeline_mode<synchronous>, transform_indices = @transform_6, window_bounds = array<i64: 64, 8>}, {pipeline_mode = #tpu.pipeline_mode<synchronous>, transform_indices = @transform_7, window_bounds = array<i64: 64, 32>}, {transform_indices = @transform_8, window_bounds = array<i64: 1, 64, 256>}]} {
    %c0 = arith.constant 0 : index
    %c0_0 = arith.constant 0 : index
    %c0_1 = arith.constant 0 : index
    %0 = vector.load %arg2[%c0, %c0_0, %c0_1] : memref<1x8x32xf32, #tpu.memory_space<vmem>>, vector<1x8x32xf32>
    %1 = vector.shape_cast %0 : vector<1x8x32xf32> to vector<8x32xf32>
    %c0_2 = arith.constant 0 : index
    %c0_3 = arith.constant 0 : index
    %2 = vector.load %arg4[%c0_2, %c0_3] : memref<32x32xf32, #tpu.memory_space<vmem>>, vector<32x32xf32>
    %cst = arith.constant dense<0.000000e+00> : vector<8x32xf32>
    %3 = tpu.matmul %1, %2, %cst {dimension_numbers = #tpu.dot_dimension_numbers<[1], [0], [0], [1], [0, 0, 1, 1], [], []>} : vector<8x32xf32>, vector<32x32xf32>, vector<8x32xf32> -> vector<8x32xf32>
    %c0_4 = arith.constant 0 : index
    %c0_5 = arith.constant 0 : index
    %4 = vector.load %arg5[%c0_4, %c0_5] : memref<1x32xf32, #tpu.memory_space<vmem>>, vector<1x32xf32>
    %5 = vector.broadcast %4 : vector<1x32xf32> to vector<8x32xf32>
    %6 = arith.addf %3, %5 : vector<8x32xf32>
    %c0_6 = arith.constant 0 : index
    %c0_7 = arith.constant 0 : index
    %7 = vector.load %arg6[%c0_6, %c0_7] : memref<32x32xf32, #tpu.memory_space<vmem>>, vector<32x32xf32>
    %c0_8 = arith.constant 0 : index
    %c0_9 = arith.constant 0 : index
    %c0_10 = arith.constant 0 : index
    %8 = vector.load %arg3[%c0_8, %c0_9, %c0_10] : memref<1x32x256xf32, #tpu.memory_space<vmem>>, vector<1x32x256xf32>
    %9 = vector.shape_cast %8 : vector<1x32x256xf32> to vector<32x256xf32>
    %cst_11 = arith.constant dense<0.000000e+00> : vector<32x256xf32>
    %10 = tpu.matmul %7, %9, %cst_11 {dimension_numbers = #tpu.dot_dimension_numbers<[1], [0], [0], [1], [0, 0, 1, 1], [], []>} : vector<32x32xf32>, vector<32x256xf32>, vector<32x256xf32> -> vector<32x256xf32>
    %c0_12 = arith.constant 0 : index
    %c0_13 = arith.constant 0 : index
    %11 = vector.load %arg7[%c0_12, %c0_13] : memref<32x1xf32, #tpu.memory_space<vmem>>, vector<32x1xf32>
    %12 = vector.broadcast %11 : vector<32x1xf32> to vector<32x256xf32>
    %13 = arith.addf %10, %12 : vector<32x256xf32>
    %c0_14 = arith.constant 0 : index
    %c0_15 = arith.constant 0 : index
    %14 = vector.load %arg8[%c0_14, %c0_15] : memref<64x8xf32, #tpu.memory_space<vmem>>, vector<64x8xf32>
    %cst_16 = arith.constant dense<0.000000e+00> : vector<64x32xf32>
    %15 = tpu.matmul %14, %6, %cst_16 {dimension_numbers = #tpu.dot_dimension_numbers<[1], [0], [0], [1], [0, 0, 1, 1], [], []>} : vector<64x8xf32>, vector<8x32xf32>, vector<64x32xf32> -> vector<64x32xf32>
    %c0_17 = arith.constant 0 : index
    %c0_18 = arith.constant 0 : index
    %16 = vector.load %arg9[%c0_17, %c0_18] : memref<64x32xf32, #tpu.memory_space<vmem>>, vector<64x32xf32>
    %17 = arith.mulf %15, %16 : vector<64x32xf32>
    %cst_19 = arith.constant dense<0.000000e+00> : vector<64x256xf32>
    %18 = tpu.matmul %17, %13, %cst_19 {dimension_numbers = #tpu.dot_dimension_numbers<[1], [0], [0], [1], [0, 0, 1, 1], [], []>} : vector<64x32xf32>, vector<32x256xf32>, vector<64x256xf32> -> vector<64x256xf32>
    %19 = vector.extract_strided_slice %18 {offsets = [0, 0], sizes = [8, 256], strides = [1, 1]} : vector<64x256xf32> to vector<8x256xf32>
    %cst_20 = arith.constant dense<0xFF800000> : vector<8xf32>
    %20 = vector.multi_reduction <maximumf>, %19, %cst_20 [1] : vector<8x256xf32> to vector<8xf32>
    %21 = vector.shape_cast %20 : vector<8xf32> to vector<8x1xf32>
    %cst_21 = arith.constant dense<0xFF800000> : vector<1xf32>
    %22 = vector.multi_reduction <maximumf>, %21, %cst_21 [0] : vector<8x1xf32> to vector<1xf32>
    %23 = vector.shape_cast %22 : vector<1xf32> to vector<1x1xf32>
    %24 = vector.broadcast %23 : vector<1x1xf32> to vector<8x256xf32>
    %25 = arith.subf %19, %24 : vector<8x256xf32>
    %26 = math.exp %25 : vector<8x256xf32>
    %cst_22 = arith.constant dense<0.000000e+00> : vector<8xf32>
    %27 = vector.multi_reduction <add>, %26, %cst_22 [1] : vector<8x256xf32> to vector<8xf32>
    %28 = vector.shape_cast %27 : vector<8xf32> to vector<8x1xf32>
    %cst_23 = arith.constant dense<0.000000e+00> : vector<1xf32>
    %29 = vector.multi_reduction <add>, %28, %cst_23 [0] : vector<8x1xf32> to vector<1xf32>
    %30 = vector.shape_cast %29 : vector<1xf32> to vector<1x1xf32>
    %31 = tpu.reciprocal %30 {approx = true} : vector<1x1xf32> -> vector<1x1xf32>
    %32 = arith.mulf %30, %31 : vector<1x1xf32>
    %cst_24 = arith.constant 2.000000e+00 : f32
    %33 = vector.broadcast %cst_24 : f32 to vector<1x1xf32>
    %34 = arith.subf %33, %32 : vector<1x1xf32>
    %35 = arith.mulf %31, %34 : vector<1x1xf32>
    %36 = vector.broadcast %35 : vector<1x1xf32> to vector<8x256xf32>
    %37 = arith.mulf %26, %36 : vector<8x256xf32>
    %c0_25 = arith.constant 0 : index
    %c0_26 = arith.constant 0 : index
    %c0_27 = arith.constant 0 : index
    %38 = vector.load %arg10[%c0_25, %c0_26, %c0_27] : memref<1x64x256xf32, #tpu.memory_space<vmem>>, vector<1x8x256xf32>
    %39 = vector.shape_cast %38 : vector<1x8x256xf32> to vector<8x256xf32>
    %40 = vector.shape_cast %37 : vector<8x256xf32> to vector<1x8x256xf32>
    tpu.vector_store %arg10[%c0_25, %c0_26, %c0_27], %40 {strides = array<i32>} : memref<1x64x256xf32, #tpu.memory_space<vmem>>, vector<1x8x256xf32>,
    %41 = vector.extract_strided_slice %18 {offsets = [8, 0], sizes = [8, 256], strides = [1, 1]} : vector<64x256xf32> to vector<8x256xf32>
    %cst_28 = arith.constant dense<0xFF800000> : vector<8xf32>
    %42 = vector.multi_reduction <maximumf>, %41, %cst_28 [1] : vector<8x256xf32> to vector<8xf32>
    %43 = vector.shape_cast %42 : vector<8xf32> to vector<8x1xf32>
    %cst_29 = arith.constant dense<0xFF800000> : vector<1xf32>
    %44 = vector.multi_reduction <maximumf>, %43, %cst_29 [0] : vector<8x1xf32> to vector<1xf32>
    %45 = vector.shape_cast %44 : vector<1xf32> to vector<1x1xf32>
    %46 = vector.broadcast %45 : vector<1x1xf32> to vector<8x256xf32>
    %47 = arith.subf %41, %46 : vector<8x256xf32>
    %48 = math.exp %47 : vector<8x256xf32>
    %cst_30 = arith.constant dense<0.000000e+00> : vector<8xf32>
    %49 = vector.multi_reduction <add>, %48, %cst_30 [1] : vector<8x256xf32> to vector<8xf32>
    %50 = vector.shape_cast %49 : vector<8xf32> to vector<8x1xf32>
    %cst_31 = arith.constant dense<0.000000e+00> : vector<1xf32>
    %51 = vector.multi_reduction <add>, %50, %cst_31 [0] : vector<8x1xf32> to vector<1xf32>
    %52 = vector.shape_cast %51 : vector<1xf32> to vector<1x1xf32>
    %53 = tpu.reciprocal %52 {approx = true} : vector<1x1xf32> -> vector<1x1xf32>
    %54 = arith.mulf %52, %53 : vector<1x1xf32>
    %cst_32 = arith.constant 2.000000e+00 : f32
    %55 = vector.broadcast %cst_32 : f32 to vector<1x1xf32>
    %56 = arith.subf %55, %54 : vector<1x1xf32>
    %57 = arith.mulf %53, %56 : vector<1x1xf32>
    %58 = vector.broadcast %57 : vector<1x1xf32> to vector<8x256xf32>
    %59 = arith.mulf %48, %58 : vector<8x256xf32>
    %c0_33 = arith.constant 0 : index
    %c8 = arith.constant 8 : index
    %c0_34 = arith.constant 0 : index
    %60 = vector.load %arg10[%c0_33, %c8, %c0_34] : memref<1x64x256xf32, #tpu.memory_space<vmem>>, vector<1x8x256xf32>
    %61 = vector.shape_cast %60 : vector<1x8x256xf32> to vector<8x256xf32>
    %62 = vector.shape_cast %59 : vector<8x256xf32> to vector<1x8x256xf32>
    tpu.vector_store %arg10[%c0_33, %c8, %c0_34], %62 {strides = array<i32>} : memref<1x64x256xf32, #tpu.memory_space<vmem>>, vector<1x8x256xf32>,
    %63 = vector.extract_strided_slice %18 {offsets = [16, 0], sizes = [8, 256], strides = [1, 1]} : vector<64x256xf32> to vector<8x256xf32>
    %cst_35 = arith.constant dense<0xFF800000> : vector<8xf32>
    %64 = vector.multi_reduction <maximumf>, %63, %cst_35 [1] : vector<8x256xf32> to vector<8xf32>
    %65 = vector.shape_cast %64 : vector<8xf32> to vector<8x1xf32>
    %cst_36 = arith.constant dense<0xFF800000> : vector<1xf32>
    %66 = vector.multi_reduction <maximumf>, %65, %cst_36 [0] : vector<8x1xf32> to vector<1xf32>
    %67 = vector.shape_cast %66 : vector<1xf32> to vector<1x1xf32>
    %68 = vector.broadcast %67 : vector<1x1xf32> to vector<8x256xf32>
    %69 = arith.subf %63, %68 : vector<8x256xf32>
    %70 = math.exp %69 : vector<8x256xf32>
    %cst_37 = arith.constant dense<0.000000e+00> : vector<8xf32>
    %71 = vector.multi_reduction <add>, %70, %cst_37 [1] : vector<8x256xf32> to vector<8xf32>
    %72 = vector.shape_cast %71 : vector<8xf32> to vector<8x1xf32>
    %cst_38 = arith.constant dense<0.000000e+00> : vector<1xf32>
    %73 = vector.multi_reduction <add>, %72, %cst_38 [0] : vector<8x1xf32> to vector<1xf32>
    %74 = vector.shape_cast %73 : vector<1xf32> to vector<1x1xf32>
    %75 = tpu.reciprocal %74 {approx = true} : vector<1x1xf32> -> vector<1x1xf32>
    %76 = arith.mulf %74, %75 : vector<1x1xf32>
    %cst_39 = arith.constant 2.000000e+00 : f32
    %77 = vector.broadcast %cst_39 : f32 to vector<1x1xf32>
    %78 = arith.subf %77, %76 : vector<1x1xf32>
    %79 = arith.mulf %75, %78 : vector<1x1xf32>
    %80 = vector.broadcast %79 : vector<1x1xf32> to vector<8x256xf32>
    %81 = arith.mulf %70, %80 : vector<8x256xf32>
    %c0_40 = arith.constant 0 : index
    %c16 = arith.constant 16 : index
    %c0_41 = arith.constant 0 : index
    %82 = vector.load %arg10[%c0_40, %c16, %c0_41] : memref<1x64x256xf32, #tpu.memory_space<vmem>>, vector<1x8x256xf32>
    %83 = vector.shape_cast %82 : vector<1x8x256xf32> to vector<8x256xf32>
    %84 = vector.shape_cast %81 : vector<8x256xf32> to vector<1x8x256xf32>
    tpu.vector_store %arg10[%c0_40, %c16, %c0_41], %84 {strides = array<i32>} : memref<1x64x256xf32, #tpu.memory_space<vmem>>, vector<1x8x256xf32>,
    %85 = vector.extract_strided_slice %18 {offsets = [24, 0], sizes = [8, 256], strides = [1, 1]} : vector<64x256xf32> to vector<8x256xf32>
    %cst_42 = arith.constant dense<0xFF800000> : vector<8xf32>
    %86 = vector.multi_reduction <maximumf>, %85, %cst_42 [1] : vector<8x256xf32> to vector<8xf32>
    %87 = vector.shape_cast %86 : vector<8xf32> to vector<8x1xf32>
    %cst_43 = arith.constant dense<0xFF800000> : vector<1xf32>
    %88 = vector.multi_reduction <maximumf>, %87, %cst_43 [0] : vector<8x1xf32> to vector<1xf32>
    %89 = vector.shape_cast %88 : vector<1xf32> to vector<1x1xf32>
    %90 = vector.broadcast %89 : vector<1x1xf32> to vector<8x256xf32>
    %91 = arith.subf %85, %90 : vector<8x256xf32>
    %92 = math.exp %91 : vector<8x256xf32>
    %cst_44 = arith.constant dense<0.000000e+00> : vector<8xf32>
    %93 = vector.multi_reduction <add>, %92, %cst_44 [1] : vector<8x256xf32> to vector<8xf32>
    %94 = vector.shape_cast %93 : vector<8xf32> to vector<8x1xf32>
    %cst_45 = arith.constant dense<0.000000e+00> : vector<1xf32>
    %95 = vector.multi_reduction <add>, %94, %cst_45 [0] : vector<8x1xf32> to vector<1xf32>
    %96 = vector.shape_cast %95 : vector<1xf32> to vector<1x1xf32>
    %97 = tpu.reciprocal %96 {approx = true} : vector<1x1xf32> -> vector<1x1xf32>
    %98 = arith.mulf %96, %97 : vector<1x1xf32>
    %cst_46 = arith.constant 2.000000e+00 : f32
    %99 = vector.broadcast %cst_46 : f32 to vector<1x1xf32>
    %100 = arith.subf %99, %98 : vector<1x1xf32>
    %101 = arith.mulf %97, %100 : vector<1x1xf32>
    %102 = vector.broadcast %101 : vector<1x1xf32> to vector<8x256xf32>
    %103 = arith.mulf %92, %102 : vector<8x256xf32>
    %c0_47 = arith.constant 0 : index
    %c24 = arith.constant 24 : index
    %c0_48 = arith.constant 0 : index
    %104 = vector.load %arg10[%c0_47, %c24, %c0_48] : memref<1x64x256xf32, #tpu.memory_space<vmem>>, vector<1x8x256xf32>
    %105 = vector.shape_cast %104 : vector<1x8x256xf32> to vector<8x256xf32>
    %106 = vector.shape_cast %103 : vector<8x256xf32> to vector<1x8x256xf32>
    tpu.vector_store %arg10[%c0_47, %c24, %c0_48], %106 {strides = array<i32>} : memref<1x64x256xf32, #tpu.memory_space<vmem>>, vector<1x8x256xf32>,
    %107 = vector.extract_strided_slice %18 {offsets = [32, 0], sizes = [8, 256], strides = [1, 1]} : vector<64x256xf32> to vector<8x256xf32>
    %cst_49 = arith.constant dense<0xFF800000> : vector<8xf32>
    %108 = vector.multi_reduction <maximumf>, %107, %cst_49 [1] : vector<8x256xf32> to vector<8xf32>
    %109 = vector.shape_cast %108 : vector<8xf32> to vector<8x1xf32>
    %cst_50 = arith.constant dense<0xFF800000> : vector<1xf32>
    %110 = vector.multi_reduction <maximumf>, %109, %cst_50 [0] : vector<8x1xf32> to vector<1xf32>
    %111 = vector.shape_cast %110 : vector<1xf32> to vector<1x1xf32>
    %112 = vector.broadcast %111 : vector<1x1xf32> to vector<8x256xf32>
    %113 = arith.subf %107, %112 : vector<8x256xf32>
    %114 = math.exp %113 : vector<8x256xf32>
    %cst_51 = arith.constant dense<0.000000e+00> : vector<8xf32>
    %115 = vector.multi_reduction <add>, %114, %cst_51 [1] : vector<8x256xf32> to vector<8xf32>
    %116 = vector.shape_cast %115 : vector<8xf32> to vector<8x1xf32>
    %cst_52 = arith.constant dense<0.000000e+00> : vector<1xf32>
    %117 = vector.multi_reduction <add>, %116, %cst_52 [0] : vector<8x1xf32> to vector<1xf32>
    %118 = vector.shape_cast %117 : vector<1xf32> to vector<1x1xf32>
    %119 = tpu.reciprocal %118 {approx = true} : vector<1x1xf32> -> vector<1x1xf32>
    %120 = arith.mulf %118, %119 : vector<1x1xf32>
    %cst_53 = arith.constant 2.000000e+00 : f32
    %121 = vector.broadcast %cst_53 : f32 to vector<1x1xf32>
    %122 = arith.subf %121, %120 : vector<1x1xf32>
    %123 = arith.mulf %119, %122 : vector<1x1xf32>
    %124 = vector.broadcast %123 : vector<1x1xf32> to vector<8x256xf32>
    %125 = arith.mulf %114, %124 : vector<8x256xf32>
    %c0_54 = arith.constant 0 : index
    %c32 = arith.constant 32 : index
    %c0_55 = arith.constant 0 : index
    %126 = vector.load %arg10[%c0_54, %c32, %c0_55] : memref<1x64x256xf32, #tpu.memory_space<vmem>>, vector<1x8x256xf32>
    %127 = vector.shape_cast %126 : vector<1x8x256xf32> to vector<8x256xf32>
    %128 = vector.shape_cast %125 : vector<8x256xf32> to vector<1x8x256xf32>
    tpu.vector_store %arg10[%c0_54, %c32, %c0_55], %128 {strides = array<i32>} : memref<1x64x256xf32, #tpu.memory_space<vmem>>, vector<1x8x256xf32>,
    %129 = vector.extract_strided_slice %18 {offsets = [40, 0], sizes = [8, 256], strides = [1, 1]} : vector<64x256xf32> to vector<8x256xf32>
    %cst_56 = arith.constant dense<0xFF800000> : vector<8xf32>
    %130 = vector.multi_reduction <maximumf>, %129, %cst_56 [1] : vector<8x256xf32> to vector<8xf32>
    %131 = vector.shape_cast %130 : vector<8xf32> to vector<8x1xf32>
    %cst_57 = arith.constant dense<0xFF800000> : vector<1xf32>
    %132 = vector.multi_reduction <maximumf>, %131, %cst_57 [0] : vector<8x1xf32> to vector<1xf32>
    %133 = vector.shape_cast %132 : vector<1xf32> to vector<1x1xf32>
    %134 = vector.broadcast %133 : vector<1x1xf32> to vector<8x256xf32>
    %135 = arith.subf %129, %134 : vector<8x256xf32>
    %136 = math.exp %135 : vector<8x256xf32>
    %cst_58 = arith.constant dense<0.000000e+00> : vector<8xf32>
    %137 = vector.multi_reduction <add>, %136, %cst_58 [1] : vector<8x256xf32> to vector<8xf32>
    %138 = vector.shape_cast %137 : vector<8xf32> to vector<8x1xf32>
    %cst_59 = arith.constant dense<0.000000e+00> : vector<1xf32>
    %139 = vector.multi_reduction <add>, %138, %cst_59 [0] : vector<8x1xf32> to vector<1xf32>
    %140 = vector.shape_cast %139 : vector<1xf32> to vector<1x1xf32>
    %141 = tpu.reciprocal %140 {approx = true} : vector<1x1xf32> -> vector<1x1xf32>
    %142 = arith.mulf %140, %141 : vector<1x1xf32>
    %cst_60 = arith.constant 2.000000e+00 : f32
    %143 = vector.broadcast %cst_60 : f32 to vector<1x1xf32>
    %144 = arith.subf %143, %142 : vector<1x1xf32>
    %145 = arith.mulf %141, %144 : vector<1x1xf32>
    %146 = vector.broadcast %145 : vector<1x1xf32> to vector<8x256xf32>
    %147 = arith.mulf %136, %146 : vector<8x256xf32>
    %c0_61 = arith.constant 0 : index
    %c40 = arith.constant 40 : index
    %c0_62 = arith.constant 0 : index
    %148 = vector.load %arg10[%c0_61, %c40, %c0_62] : memref<1x64x256xf32, #tpu.memory_space<vmem>>, vector<1x8x256xf32>
    %149 = vector.shape_cast %148 : vector<1x8x256xf32> to vector<8x256xf32>
    %150 = vector.shape_cast %147 : vector<8x256xf32> to vector<1x8x256xf32>
    tpu.vector_store %arg10[%c0_61, %c40, %c0_62], %150 {strides = array<i32>} : memref<1x64x256xf32, #tpu.memory_space<vmem>>, vector<1x8x256xf32>,
    %151 = vector.extract_strided_slice %18 {offsets = [48, 0], sizes = [8, 256], strides = [1, 1]} : vector<64x256xf32> to vector<8x256xf32>
    %cst_63 = arith.constant dense<0xFF800000> : vector<8xf32>
    %152 = vector.multi_reduction <maximumf>, %151, %cst_63 [1] : vector<8x256xf32> to vector<8xf32>
    %153 = vector.shape_cast %152 : vector<8xf32> to vector<8x1xf32>
    %cst_64 = arith.constant dense<0xFF800000> : vector<1xf32>
    %154 = vector.multi_reduction <maximumf>, %153, %cst_64 [0] : vector<8x1xf32> to vector<1xf32>
    %155 = vector.shape_cast %154 : vector<1xf32> to vector<1x1xf32>
    %156 = vector.broadcast %155 : vector<1x1xf32> to vector<8x256xf32>
    %157 = arith.subf %151, %156 : vector<8x256xf32>
    %158 = math.exp %157 : vector<8x256xf32>
    %cst_65 = arith.constant dense<0.000000e+00> : vector<8xf32>
    %159 = vector.multi_reduction <add>, %158, %cst_65 [1] : vector<8x256xf32> to vector<8xf32>
    %160 = vector.shape_cast %159 : vector<8xf32> to vector<8x1xf32>
    %cst_66 = arith.constant dense<0.000000e+00> : vector<1xf32>
    %161 = vector.multi_reduction <add>, %160, %cst_66 [0] : vector<8x1xf32> to vector<1xf32>
    %162 = vector.shape_cast %161 : vector<1xf32> to vector<1x1xf32>
    %163 = tpu.reciprocal %162 {approx = true} : vector<1x1xf32> -> vector<1x1xf32>
    %164 = arith.mulf %162, %163 : vector<1x1xf32>
    %cst_67 = arith.constant 2.000000e+00 : f32
    %165 = vector.broadcast %cst_67 : f32 to vector<1x1xf32>
    %166 = arith.subf %165, %164 : vector<1x1xf32>
    %167 = arith.mulf %163, %166 : vector<1x1xf32>
    %168 = vector.broadcast %167 : vector<1x1xf32> to vector<8x256xf32>
    %169 = arith.mulf %158, %168 : vector<8x256xf32>
    %c0_68 = arith.constant 0 : index
    %c48 = arith.constant 48 : index
    %c0_69 = arith.constant 0 : index
    %170 = vector.load %arg10[%c0_68, %c48, %c0_69] : memref<1x64x256xf32, #tpu.memory_space<vmem>>, vector<1x8x256xf32>
    %171 = vector.shape_cast %170 : vector<1x8x256xf32> to vector<8x256xf32>
    %172 = vector.shape_cast %169 : vector<8x256xf32> to vector<1x8x256xf32>
    tpu.vector_store %arg10[%c0_68, %c48, %c0_69], %172 {strides = array<i32>} : memref<1x64x256xf32, #tpu.memory_space<vmem>>, vector<1x8x256xf32>,
    %173 = vector.extract_strided_slice %18 {offsets = [56, 0], sizes = [8, 256], strides = [1, 1]} : vector<64x256xf32> to vector<8x256xf32>
    %cst_70 = arith.constant dense<0xFF800000> : vector<8xf32>
    %174 = vector.multi_reduction <maximumf>, %173, %cst_70 [1] : vector<8x256xf32> to vector<8xf32>
    %175 = vector.shape_cast %174 : vector<8xf32> to vector<8x1xf32>
    %cst_71 = arith.constant dense<0xFF800000> : vector<1xf32>
    %176 = vector.multi_reduction <maximumf>, %175, %cst_71 [0] : vector<8x1xf32> to vector<1xf32>
    %177 = vector.shape_cast %176 : vector<1xf32> to vector<1x1xf32>
    %178 = vector.broadcast %177 : vector<1x1xf32> to vector<8x256xf32>
    %179 = arith.subf %173, %178 : vector<8x256xf32>
    %180 = math.exp %179 : vector<8x256xf32>
    %cst_72 = arith.constant dense<0.000000e+00> : vector<8xf32>
    %181 = vector.multi_reduction <add>, %180, %cst_72 [1] : vector<8x256xf32> to vector<8xf32>
    %182 = vector.shape_cast %181 : vector<8xf32> to vector<8x1xf32>
    %cst_73 = arith.constant dense<0.000000e+00> : vector<1xf32>
    %183 = vector.multi_reduction <add>, %182, %cst_73 [0] : vector<8x1xf32> to vector<1xf32>
    %184 = vector.shape_cast %183 : vector<1xf32> to vector<1x1xf32>
    %185 = tpu.reciprocal %184 {approx = true} : vector<1x1xf32> -> vector<1x1xf32>
    %186 = arith.mulf %184, %185 : vector<1x1xf32>
    %cst_74 = arith.constant 2.000000e+00 : f32
    %187 = vector.broadcast %cst_74 : f32 to vector<1x1xf32>
    %188 = arith.subf %187, %186 : vector<1x1xf32>
    %189 = arith.mulf %185, %188 : vector<1x1xf32>
    %190 = vector.broadcast %189 : vector<1x1xf32> to vector<8x256xf32>
    %191 = arith.mulf %180, %190 : vector<8x256xf32>
    %c0_75 = arith.constant 0 : index
    %c56 = arith.constant 56 : index
    %c0_76 = arith.constant 0 : index
    %192 = vector.load %arg10[%c0_75, %c56, %c0_76] : memref<1x64x256xf32, #tpu.memory_space<vmem>>, vector<1x8x256xf32>
    %193 = vector.shape_cast %192 : vector<1x8x256xf32> to vector<8x256xf32>
    %194 = vector.shape_cast %191 : vector<8x256xf32> to vector<1x8x256xf32>
    tpu.vector_store %arg10[%c0_75, %c56, %c0_76], %194 {strides = array<i32>} : memref<1x64x256xf32, #tpu.memory_space<vmem>>, vector<1x8x256xf32>,
    return
  }
  func.func @transform_0(%arg0: i32, %arg1: i32) -> (i32, i32, i32) {
    %c0_i32 = arith.constant 0 : i32
    %c0_i32_0 = arith.constant 0 : i32
    return %arg0, %arg1, %c0_i32 : i32, i32, i32
  }
  func.func @transform_1(%arg0: i32, %arg1: i32) -> (i32, i32, i32) {
    %c0_i32 = arith.constant 0 : i32
    %c0_i32_0 = arith.constant 0 : i32
    %c0_i32_1 = arith.constant 0 : i32
    return %arg0, %c0_i32, %c0_i32_0 : i32, i32, i32
  }
  func.func @transform_2(%arg0: i32, %arg1: i32) -> (i32, i32) {
    %c0_i32 = arith.constant 0 : i32
    %c0_i32_0 = arith.constant 0 : i32
    %c0_i32_1 = arith.constant 0 : i32
    return %c0_i32, %c0_i32_0 : i32, i32
  }
  func.func @transform_3(%arg0: i32, %arg1: i32) -> (i32, i32) {
    %c0_i32 = arith.constant 0 : i32
    %c0_i32_0 = arith.constant 0 : i32
    %c0_i32_1 = arith.constant 0 : i32
    return %c0_i32, %c0_i32_0 : i32, i32
  }
  func.func @transform_4(%arg0: i32, %arg1: i32) -> (i32, i32) {
    %c0_i32 = arith.constant 0 : i32
    %c0_i32_0 = arith.constant 0 : i32
    %c0_i32_1 = arith.constant 0 : i32
    return %c0_i32, %c0_i32_0 : i32, i32
  }
  func.func @transform_5(%arg0: i32, %arg1: i32) -> (i32, i32) {
    %c0_i32 = arith.constant 0 : i32
    %c0_i32_0 = arith.constant 0 : i32
    %c0_i32_1 = arith.constant 0 : i32
    return %c0_i32, %c0_i32_0 : i32, i32
  }
  func.func @transform_6(%arg0: i32, %arg1: i32) -> (i32, i32) {
    %c0_i32 = arith.constant 0 : i32
    %c0_i32_0 = arith.constant 0 : i32
    %c0_i32_1 = arith.constant 0 : i32
    return %c0_i32, %c0_i32_0 : i32, i32
  }
  func.func @transform_7(%arg0: i32, %arg1: i32) -> (i32, i32) {
    %c0_i32 = arith.constant 0 : i32
    %c0_i32_0 = arith.constant 0 : i32
    %c0_i32_1 = arith.constant 0 : i32
    return %c0_i32, %c0_i32_0 : i32, i32
  }
  func.func @transform_8(%arg0: i32, %arg1: i32) -> (i32, i32, i32) {
    %c0_i32 = arith.constant 0 : i32
    %c0_i32_0 = arith.constant 0 : i32
    return %arg0, %arg1, %c0_i32 : i32, i32, i32
  }
}

</mosaic_0001>

<llo_original>
// kernel: tpu_custom_call.1
$region0: #{tpu_custom_call.1}
  #allocation0 [shape = 'u32[]', space=smem, size = 0x4, offset = 0x4, fixed_abs, tag = 'smem constant byte address 0x4 - core index']
  #allocation1 [shape = 'u32[144,128]{1,0:T(1,128)}', space=vmem, size = 0x12000, scoped, tag = 'internal scratch']
  %s0 = inlined_call_operand.vmem [shape: f32[2,8,32], index: 0, kind: input, shape index: {}]
  %s1 = inlined_call_operand.vmem [shape: f32[2,32,256], index: 1, kind: input, shape index: {}]
  %s2 = inlined_call_operand.vmem [shape: f32[32,32], index: 2, kind: input, shape index: {}]
  %s3 = inlined_call_operand.hbm [shape: f32[1,32], index: 3, kind: input, shape index: {}]
  %s4 = inlined_call_operand.hbm [shape: f32[32,32], index: 4, kind: input, shape index: {}]
  %s5 = inlined_call_operand.vmem [shape: f32[32,1], index: 5, kind: input, shape index: {}]
  %s6 = inlined_call_operand.vmem [shape: f32[64,8], index: 6, kind: input, shape index: {}]
  %s7 = inlined_call_operand.vmem [shape: f32[64,32], index: 7, kind: input, shape index: {}]
  %s8 = inlined_call_operand.hbm [shape: f32[2,64,256], index: 8, kind: output, shape index: {}]
  %s9 = sld [smem:[#allocation0]]
  $region73: #{tpu_custom_call.1} parent=0
    _
  %s11 = ssub.s32 1, %s9
  %s12 = scalar_select 0, %s11, %s9
  $region1: #{tpu_custom_call.1} parent=0
    #allocation2 [shape = 'u8[512]{0}', space=vmem, size = 0x400, scoped, tag = 'input window, operand 3, single buffered']
    #allocation3 [shape = 's32[2]{0}', space=sflag, size = 0x8, scoped, tag = 'scoped memory for tpu_custom_call.1']
    #allocation4 [shape = 's32[2]{0}', space=sflag, size = 0x8, scoped, tag = 'scoped memory for tpu_custom_call.1']
    #allocation5 [shape = 'u8[16384]{0}', space=vmem, size = 0x4000, scoped, tag = 'input window, operand 4, single buffered']
    #allocation6 [shape = 's32[1]{0}', space=sflag, size = 0x4, scoped, tag = 'scoped memory for tpu_custom_call.1']
    #allocation7 [shape = 'u8[131072]{0}', space=vmem, size = 0x20000, scoped, tag = 'output window, operand 0']
    %13 = vsyncpa [#allocation3], 0
    %14 = vsyncpa [#allocation6], 0
    %15 = vsyncpa [#allocation4], 0
    %s16 = scalar_lea.sflag [#allocation4], 1
    %17 = vsyncpa %s16, 0
    loop: start=0, step=1, limit=4
    $region2: #{tpu_custom_call.1} parent=1 // loop_pre_header
      _
    $region3: #{tpu_custom_call.1} parent=1 // loop_header
      %s19 = sphi 0, %s23
      %p20 = scmp.ge.s32.totalorder %s19, 4
      %s26 = sphi 0, %s38
      %s27 = sphi 0, %s34
      %s28 = sphi 0, %s26
      %s29 = sphi 0, %s27
      %s30 = sphi 0, %s28
      %s31 = sphi 0, %s29
      %s43 = sphi 0, %s45
      %s46 = sphi 0, %s43
      %s47 = sphi 0, %s46
      %s63 = sphi 0, %s47
      %s69 = sphi 0, %s71
      %s72 = sphi 0, %s69
      %s73 = sphi 0, %s72
      %s89 = sphi 0, %s73
      %s93 = sphi 0, %s93
      %s95 = sphi 0, %s93
      %s96 = sphi 0, %s95
      %s110 = sphi 0, %s96
      %s114 = sphi 0, %s114
      %s116 = sphi 0, %s114
      %s117 = sphi 0, %s116
      %s131 = sphi 0, %s117
      %s135 = sphi 0, %s135
      %s137 = sphi 0, %s135
      %s138 = sphi 0, %s137
      %s152 = sphi 0, %s138
      %s156 = sphi 0, %s156
      %s158 = sphi 0, %s156
      %s159 = sphi 0, %s158
      %s173 = sphi 0, %s159
      %s177 = sphi 0, %s177
      %s179 = sphi 0, %s177
      %s180 = sphi 0, %s179
      %s194 = sphi 0, %s180
      %s198 = sphi 0, %s198
      %s200 = sphi 0, %s198
      %s201 = sphi 0, %s200
      %s215 = sphi 0, %s201
      %s223 = sphi 0, %s225
      %s226 = sphi 0, %s223
      %s227 = sphi 0, %s226
      %s243 = sphi 0, %s227
    $region4: #{tpu_custom_call.1} parent=1 // loop_header_branch
      %22 = sbr.rel (%p20) target = $region8
    $region5: #{tpu_custom_call.1} parent=1 // loop_body
      %s24 = ssub.s32 %s19, 1
      %s25 = ssub.s32 %s19, 2
      %s32 = sadd.s32 1, %s27
      %p33 = scmp.ge.s32.totalorder %s32, 1
      %s34 = scalar_select %p33, 0, %s32
      %s35 = sadd.s32 1, %s26
      %s36 = scalar_select %p33, %s35, %s26
      %p37 = scmp.ge.s32.totalorder %s36, 2
      %s38 = scalar_select %p37, 0, %s36
      %s39 = ssub.s32 %s26, %s38
      %s40 = ssub.s32 %s27, %s34
      %s41 = sor.u32 %s39, %s40
      %p42 = scmp.eq.s32.totalorder %s41, 0
      %s44 = sadd.s32 %s43, 1
      %s45 = scalar_select %p42, %s43, %s44
      %p48 = pneg %p42
      %p49 = scmp.eq.s32.totalorder %s19, 1
      %p50 = por %p48, %p49
      %p51 = scmp.ne.s32.totalorder %s43, %s46
      %p52 = scmp.eq.s32.totalorder %s19, 0
      %p53 = por %p51, %p52
      %p54 = scmp.ne.s32.totalorder %s43, %s46
      %p55 = scmp.eq.s32.totalorder %s24, 1
      %p56 = por %p54, %p55
      %p57 = scmp.ne.s32.totalorder %s46, %s47
      %p58 = scmp.eq.s32.totalorder %s24, 0
      %p59 = por %p57, %p58
      %p60 = scmp.ne.s32.totalorder %s46, %s47
      %p61 = scmp.eq.s32.totalorder %s25, 1
      %p62 = por %p60, %p61
      %p64 = scmp.ne.s32.totalorder %s47, %s63
      %p65 = scmp.eq.s32.totalorder %s25, 0
      %p66 = por %p64, %p65
      %s67 = ssub.s32 %s26, %s38
      %p68 = scmp.eq.s32.totalorder %s67, 0
      %s70 = sadd.s32 %s69, 1
      %s71 = scalar_select %p68, %s69, %s70
      %p74 = pneg %p68
      %p75 = scmp.eq.s32.totalorder %s19, 1
      %p76 = por %p74, %p75
      %p77 = scmp.ne.s32.totalorder %s69, %s72
      %p78 = scmp.eq.s32.totalorder %s19, 0
      %p79 = por %p77, %p78
      %p80 = scmp.ne.s32.totalorder %s69, %s72
      %p81 = scmp.eq.s32.totalorder %s24, 1
      %p82 = por %p80, %p81
      %p83 = scmp.ne.s32.totalorder %s72, %s73
      %p84 = scmp.eq.s32.totalorder %s24, 0
      %p85 = por %p83, %p84
      %p86 = scmp.ne.s32.totalorder %s72, %s73
      %p87 = scmp.eq.s32.totalorder %s25, 1
      %p88 = por %p86, %p87
      %p90 = scmp.ne.s32.totalorder %s73, %s89
      %p91 = scmp.eq.s32.totalorder %s25, 0
      %p92 = por %p90, %p91
      %s94 = sadd.s32 %s93, 1
      %p97 = scmp.eq.s32.totalorder %s19, 1
      %p98 = scmp.ne.s32.totalorder %s93, %s95
      %p99 = scmp.eq.s32.totalorder %s19, 0
      %p100 = por %p98, %p99
      %p101 = scmp.ne.s32.totalorder %s93, %s95
      %p102 = scmp.eq.s32.totalorder %s24, 1
      %p103 = por %p101, %p102
      %p104 = scmp.ne.s32.totalorder %s95, %s96
      %p105 = scmp.eq.s32.totalorder %s24, 0
      %p106 = por %p104, %p105
      %p107 = scmp.ne.s32.totalorder %s95, %s96
      %p108 = scmp.eq.s32.totalorder %s25, 1
      %p109 = por %p107, %p108
      %p111 = scmp.ne.s32.totalorder %s96, %s110
      %p112 = scmp.eq.s32.totalorder %s25, 0
      %p113 = por %p111, %p112
      %s115 = sadd.s32 %s114, 1
      %p118 = scmp.eq.s32.totalorder %s19, 1
      %p119 = scmp.ne.s32.totalorder %s114, %s116
      %p120 = scmp.eq.s32.totalorder %s19, 0
      %p121 = por %p119, %p120
      %p122 = scmp.ne.s32.totalorder %s114, %s116
      %p123 = scmp.eq.s32.totalorder %s24, 1
      %p124 = por %p122, %p123
      %p125 = scmp.ne.s32.totalorder %s116, %s117
      %p126 = scmp.eq.s32.totalorder %s24, 0
      %p127 = por %p125, %p126
      %p128 = scmp.ne.s32.totalorder %s116, %s117
      %p129 = scmp.eq.s32.totalorder %s25, 1
      %p130 = por %p128, %p129
      %p132 = scmp.ne.s32.totalorder %s117, %s131
      %p133 = scmp.eq.s32.totalorder %s25, 0
      %p134 = por %p132, %p133
      %s136 = sadd.s32 %s135, 1
      %p139 = scmp.eq.s32.totalorder %s19, 1
      %p140 = scmp.ne.s32.totalorder %s135, %s137
      %p141 = scmp.eq.s32.totalorder %s19, 0
      %p142 = por %p140, %p141
      %p143 = scmp.ne.s32.totalorder %s135, %s137
      %p144 = scmp.eq.s32.totalorder %s24, 1
      %p145 = por %p143, %p144
      %p146 = scmp.ne.s32.totalorder %s137, %s138
      %p147 = scmp.eq.s32.totalorder %s24, 0
      %p148 = por %p146, %p147
      %p149 = scmp.ne.s32.totalorder %s137, %s138
      %p150 = scmp.eq.s32.totalorder %s25, 1
      %p151 = por %p149, %p150
      %p153 = scmp.ne.s32.totalorder %s138, %s152
      %p154 = scmp.eq.s32.totalorder %s25, 0
      %p155 = por %p153, %p154
      %s157 = sadd.s32 %s156, 1
      %p160 = scmp.eq.s32.totalorder %s19, 1
      %p161 = scmp.ne.s32.totalorder %s156, %s158
      %p162 = scmp.eq.s32.totalorder %s19, 0
      %p163 = por %p161, %p162
      %p164 = scmp.ne.s32.totalorder %s156, %s158
      %p165 = scmp.eq.s32.totalorder %s24, 1
      %p166 = por %p164, %p165
      %p167 = scmp.ne.s32.totalorder %s158, %s159
      %p168 = scmp.eq.s32.totalorder %s24, 0
      %p169 = por %p167, %p168
      %p170 = scmp.ne.s32.totalorder %s158, %s159
      %p171 = scmp.eq.s32.totalorder %s25, 1
      %p172 = por %p170, %p171
      %p174 = scmp.ne.s32.totalorder %s159, %s173
      %p175 = scmp.eq.s32.totalorder %s25, 0
      %p176 = por %p174, %p175
      %s178 = sadd.s32 %s177, 1
      %p181 = scmp.eq.s32.totalorder %s19, 1
      %p182 = scmp.ne.s32.totalorder %s177, %s179
      %p183 = scmp.eq.s32.totalorder %s19, 0
      %p184 = por %p182, %p183
      %p185 = scmp.ne.s32.totalorder %s177, %s179
      %p186 = scmp.eq.s32.totalorder %s24, 1
      %p187 = por %p185, %p186
      %p188 = scmp.ne.s32.totalorder %s179, %s180
      %p189 = scmp.eq.s32.totalorder %s24, 0
      %p190 = por %p188, %p189
      %p191 = scmp.ne.s32.totalorder %s179, %s180
      %p192 = scmp.eq.s32.totalorder %s25, 1
      %p193 = por %p191, %p192
      %p195 = scmp.ne.s32.totalorder %s180, %s194
      %p196 = scmp.eq.s32.totalorder %s25, 0
      %p197 = por %p195, %p196
      %s199 = sadd.s32 %s198, 1
      %p202 = scmp.eq.s32.totalorder %s19, 1
      %p203 = scmp.ne.s32.totalorder %s198, %s200
      %p204 = scmp.eq.s32.totalorder %s19, 0
      %p205 = por %p203, %p204
      %p206 = scmp.ne.s32.totalorder %s198, %s200
      %p207 = scmp.eq.s32.totalorder %s24, 1
      %p208 = por %p206, %p207
      %p209 = scmp.ne.s32.totalorder %s200, %s201
      %p210 = scmp.eq.s32.totalorder %s24, 0
      %p211 = por %p209, %p210
      %p212 = scmp.ne.s32.totalorder %s200, %s201
      %p213 = scmp.eq.s32.totalorder %s25, 1
      %p214 = por %p212, %p213
      %p216 = scmp.ne.s32.totalorder %s201, %s215
      %p217 = scmp.eq.s32.totalorder %s25, 0
      %p218 = por %p216, %p217
      %s219 = ssub.s32 %s26, %s38
      %s220 = ssub.s32 %s27, %s34
      %s221 = sor.u32 %s219, %s220
      %p222 = scmp.eq.s32.totalorder %s221, 0
      %s224 = sadd.s32 %s223, 1
      %s225 = scalar_select %p222, %s223, %s224
      %p228 = pneg %p222
      %p229 = scmp.eq.s32.totalorder %s19, 1
      %p230 = por %p228, %p229
      %p231 = scmp.ne.s32.totalorder %s223, %s226
      %p232 = scmp.eq.s32.totalorder %s19, 0
      %p233 = por %p231, %p232
      %p234 = scmp.ne.s32.totalorder %s223, %s226
      %p235 = scmp.eq.s32.totalorder %s24, 1
      %p236 = por %p234, %p235
      %p237 = scmp.ne.s32.totalorder %s226, %s227
      %p238 = scmp.eq.s32.totalorder %s24, 0
      %p239 = por %p237, %p238
      %p240 = scmp.ne.s32.totalorder %s226, %s227
      %p241 = scmp.eq.s32.totalorder %s25, 1
      %p242 = por %p240, %p241
      %p244 = scmp.ne.s32.totalorder %s227, %s243
      %p245 = scmp.eq.s32.totalorder %s25, 0
      %p246 = por %p244, %p245
      %p247 = scmp.le.s32.totalorder 1, %s19
      %p248 = scmp.lt.s32.totalorder %s19, 3
      %p249 = pnand %p247, %p248
      %p250 = pneg %p249
      // Predicated region
      $region9: #{tpu_custom_call.1} parent=5 // pred_check
        _
      $region10: #{tpu_custom_call.1} parent=5 // pred_check_branch
        %252 = sbr.rel (%p249) target = $region12
      $region11: #{tpu_custom_call.1} parent=5 // pred_region
        %s253 = ssub.s32 %s19, 1
        // Predicated region
        $region13: #{tpu_custom_call.1} parent=11 // pred_check
          %p254 = pneg %p106
        $region14: #{tpu_custom_call.1} parent=11 // pred_check_branch
          %256 = sbr.rel (%p254) target = $region16
        $region15: #{tpu_custom_call.1} parent=11 // pred_region
          _
        $region16: #{tpu_custom_call.1} parent=11 // pred_fallthru
          _
        // Predicated region
        $region17: #{tpu_custom_call.1} parent=11 // pred_check
          %p257 = pneg %p127
        $region18: #{tpu_custom_call.1} parent=11 // pred_check_branch
          %259 = sbr.rel (%p257) target = $region20
        $region19: #{tpu_custom_call.1} parent=11 // pred_region
          %s261 = ssub.s32 16, 16
          %262 = vsyncadd [#allocation3], %s261
          %s264 = sshll.u32 [#allocation2], 4
          %s265 = int_to_ptr.vmem [resolvable:$true] %s264
          %267 = dma.hbm_to_vmem [thread:$0]  %s3, 16, %s265, [#allocation3]
        $region20: #{tpu_custom_call.1} parent=11 // pred_fallthru
          _
        // Predicated region
        $region21: #{tpu_custom_call.1} parent=11 // pred_check
          %p268 = pneg %p148
        $region22: #{tpu_custom_call.1} parent=11 // pred_check_branch
          %270 = sbr.rel (%p268) target = $region24
        $region23: #{tpu_custom_call.1} parent=11 // pred_region
          %s272 = ssub.s32 512, 512
          %273 = vsyncadd [#allocation6], %s272
          %s274 = sshll.u32 [#allocation5], 4
          %s275 = int_to_ptr.vmem [resolvable:$true] %s274
          %280 = dma.hbm_to_vmem [thread:$0]  %s4, 512, %s275, [#allocation6], 128, 128, 8
        $region24: #{tpu_custom_call.1} parent=11 // pred_fallthru
          _
        // Predicated region
        $region25: #{tpu_custom_call.1} parent=11 // pred_check
          %p281 = pneg %p169
        $region26: #{tpu_custom_call.1} parent=11 // pred_check_branch
          %283 = sbr.rel (%p281) target = $region28
        $region27: #{tpu_custom_call.1} parent=11 // pred_region
          _
        $region28: #{tpu_custom_call.1} parent=11 // pred_fallthru
          _
        // Predicated region
        $region29: #{tpu_custom_call.1} parent=11 // pred_check
          %p284 = pneg %p190
        $region30: #{tpu_custom_call.1} parent=11 // pred_check_branch
          %286 = sbr.rel (%p284) target = $region32
        $region31: #{tpu_custom_call.1} parent=11 // pred_region
          _
        $region32: #{tpu_custom_call.1} parent=11 // pred_fallthru
          _
        // Predicated region
        $region33: #{tpu_custom_call.1} parent=11 // pred_check
          %p287 = pneg %p211
        $region34: #{tpu_custom_call.1} parent=11 // pred_check_branch
          %289 = sbr.rel (%p287) target = $region36
        $region35: #{tpu_custom_call.1} parent=11 // pred_region
          _
        $region36: #{tpu_custom_call.1} parent=11 // pred_fallthru
          _
      $region12: #{tpu_custom_call.1} parent=5 // pred_fallthru
        _
      %p290 = scmp.lt.s32.totalorder %s19, 2
      // Predicated region
      $region37: #{tpu_custom_call.1} parent=5 // pred_check
        %p291 = pneg %p290
      $region38: #{tpu_custom_call.1} parent=5 // pred_check_branch
        %293 = sbr.rel (%p291) target = $region40
      $region39: #{tpu_custom_call.1} parent=5 // pred_region
        // Predicated region
        $region41: #{tpu_custom_call.1} parent=39 // pred_check
          %p294 = pneg %p53
        $region42: #{tpu_custom_call.1} parent=39 // pred_check_branch
          %296 = sbr.rel (%p294) target = $region44
        $region43: #{tpu_custom_call.1} parent=39 // pred_region
          %p297 = scmp.lt.s32.totalorder %s26, 1
          %s298 = scalar_select %p297, %s26, 1
          %p299 = scmp.lt.s32.totalorder %s27, 0
          %s300 = scalar_select %p299, %s27, 0
          %s301 = sadd.s32 %s300, %s298
          %s302 = smul.addr %s301, 8
          %s303 = scalar_lea.vmem %s0, %s302
        $region44: #{tpu_custom_call.1} parent=39 // pred_fallthru
          _
        // Predicated region
        $region45: #{tpu_custom_call.1} parent=39 // pred_check
          %p304 = pneg %p79
        $region46: #{tpu_custom_call.1} parent=39 // pred_check_branch
          %306 = sbr.rel (%p304) target = $region48
        $region47: #{tpu_custom_call.1} parent=39 // pred_region
          %p307 = scmp.lt.s32.totalorder %s26, 1
          %s308 = scalar_select %p307, %s26, 1
          %s309 = smul.addr %s308, 8
          %s310 = smul.addr %s309, 8
          %s311 = scalar_lea.vmem %s1, %s310
        $region48: #{tpu_custom_call.1} parent=39 // pred_fallthru
          _
      $region40: #{tpu_custom_call.1} parent=5 // pred_fallthru
        _
      %p312 = scmp.le.s32.totalorder 1, %s19
      %p313 = scmp.lt.s32.totalorder %s19, 3
      %p314 = pnand %p312, %p313
      %p315 = pneg %p314
      // Predicated region
      $region49: #{tpu_custom_call.1} parent=5 // pred_check
        _
      $region50: #{tpu_custom_call.1} parent=5 // pred_check_branch
        %317 = sbr.rel (%p314) target = $region52
      $region51: #{tpu_custom_call.1} parent=5 // pred_region
        %s318 = ssub.s32 %s19, 1
        // Predicated region
        $region53: #{tpu_custom_call.1} parent=51 // pred_check
          %p319 = pneg %p127
        $region54: #{tpu_custom_call.1} parent=51 // pred_check_branch
          %321 = sbr.rel (%p319) target = $region56
        $region55: #{tpu_custom_call.1} parent=51 // pred_region
          %322 = dma.done [#allocation3], 16
        $region56: #{tpu_custom_call.1} parent=51 // pred_fallthru
          _
        // Predicated region
        $region57: #{tpu_custom_call.1} parent=51 // pred_check
          %p323 = pneg %p148
        $region58: #{tpu_custom_call.1} parent=51 // pred_check_branch
          %325 = sbr.rel (%p323) target = $region60
        $region59: #{tpu_custom_call.1} parent=51 // pred_region
          %326 = dma.done [#allocation6], 512
        $region60: #{tpu_custom_call.1} parent=51 // pred_fallthru
          _
        %p327 = scmp.lt.s32.totalorder %s28, 1
        %s328 = scalar_select %p327, %s28, 1
        %p329 = scmp.lt.s32.totalorder %s29, 0
        %s330 = scalar_select %p329, %s29, 0
        %s331 = sadd.s32 %s330, %s328
        %s332 = smul.addr %s331, 8
        %s333 = scalar_lea.vmem %s0, %s332
        %p334 = pneg %p59
        %p335 = pneg %p56
        %p336 = scmp.lt.s32.totalorder %s28, 1
        %s337 = scalar_select %p336, %s28, 1
        %s338 = smul.addr %s337, 8
        %s339 = smul.addr %s338, 8
        %s340 = scalar_lea.vmem %s1, %s339
        %p341 = pneg %p85
        %p342 = pneg %p82
        %p343 = pneg %p106
        %p344 = pneg %p103
        %p345 = pneg %p127
        %p346 = pneg %p124
        %p347 = pneg %p148
        %p348 = pneg %p145
        %p349 = pneg %p169
        %p350 = pneg %p166
        %p351 = pneg %p190
        %p352 = pneg %p187
        %p353 = pneg %p211
        %p354 = pneg %p208
        %p355 = pneg %p239
        %p356 = pneg %p236
        %s357 = sand.u32 %s226, 1
        %s358 = scalar_lea.sflag [#allocation4], %s357
        %s359 = sand.u32 %s226, 1
        %s360 = smul.addr %s359, 128
        %s361 = scalar_lea.vmem [#allocation7], %s360
        %p362 = scmp.lt.s32.totalorder %s28, 1
        %s363 = scalar_select %p362, %s28, 1
        %p364 = scmp.lt.s32.totalorder %s29, 0
        %s365 = scalar_select %p364, %s29, 0
        %s366 = sadd.s32 %s365, %s363
        %s367 = smul.addr %s366, 8
        %s368 = scalar_lea.vmem %s0, %s367
        %p369 = scmp.lt.s32.totalorder %s28, 1
        %s370 = scalar_select %p369, %s28, 1
        %s371 = smul.addr %s370, 8
        %s372 = smul.addr %s371, 8
        %s373 = scalar_lea.vmem %s1, %s372
        %s374 = smul.u32 8, %s29
        %v375 = vld [vmem:[%s368] sm:$0xff]
        %v376 = vld [vmem:[%s2] sm:$0xff]
        %v377 = vld [vmem:[%s2 + $0x8] sm:$0xff]
        %v378 = vld [vmem:[%s2 + $0x10] sm:$0xff]
        %v379 = vld [vmem:[%s2 + $0x18] sm:$0xff]
        %v380 = vld [vmem:[#allocation2] sm:$0x1]
        %v382 = vlaneseq
        %v383 = vshrl.u32 %v382, 7
        %v384 = vsub.s32 0, %v383
        %v385 = vrot.slane %v380, %v384
        %vm387 = vcmask 261120
        %v389 = vsel %vm387, %v375, 0
        %391 = vmatprep.subr.mxu0 0.0
        %392 = vmatpush1.msra.mxu0 %v376
        %393 = vmatprep.subr.mxu0 0.0
        %394 = vmatpush1.msra.mxu0 %v377
        %395 = vmatprep.subr.mxu0 0.0
        %396 = vmatpush1.msra.mxu0 %v378
        %397 = vmatprep.subr.mxu0 0.0
        %398 = vmatpush1.msra.mxu0 %v379
        %399 = vmatprep.subr.mxu0 0.0
        %400 = vmatpush1.msra.mxu0 0.0
        %401 = vmatprep.subr.mxu0 0.0
        %402 = vmatpush1.msra.mxu0 0.0
        %403 = vmatprep.subr.mxu0 0.0
        %404 = vmatpush1.msra.mxu0 0.0
        %405 = vmatprep.subr.mxu0 0.0
        %406 = vmatpush1.msra.mxu0 0.0
        %407 = vmatprep.subr.mxu0 0.0
        %408 = vmatpush1.msra.mxu0 0.0
        %409 = vmatprep.subr.mxu0 0.0
        %410 = vmatpush1.msra.mxu0 0.0
        %411 = vmatprep.subr.mxu0 0.0
        %412 = vmatpush1.msra.mxu0 0.0
        %413 = vmatprep.subr.mxu0 0.0
        %414 = vmatpush1.msra.mxu0 0.0
        %415 = vmatprep.subr.mxu0 0.0
        %416 = vmatpush1.msra.mxu0 0.0
        %417 = vmatprep.subr.mxu0 0.0
        %418 = vmatpush1.msra.mxu0 0.0
        %419 = vmatprep.subr.mxu0 0.0
        %420 = vmatpush1.msra.mxu0 0.0
        %421 = vmatprep.subr.mxu0 0.0
        %422 = vmatpush1.msra.mxu0 0.0
        %423 = vmatprep.subr.mxu0 0.0
        %424 = vmatpush1.msra.mxu0 0.0
        %425 = vmatprep.subr.mxu0 0.0
        %426 = vmatpush1.msra.mxu0 0.0
        %427 = vmatprep.subr.mxu0 0.0
        %428 = vmatpush1.msra.mxu0 0.0
        %429 = vmatprep.subr.mxu0 0.0
        %430 = vmatpush1.msra.mxu0 0.0
        %431 = vmatprep.subr.mxu0 0.0
        %432 = vmatpush1.msra.mxu0 0.0
        %433 = vmatprep.subr.mxu0 0.0
        %434 = vmatpush1.msra.mxu0 0.0
        %435 = vmatprep.subr.mxu0 0.0
        %436 = vmatpush1.msra.mxu0 0.0
        %437 = vmatprep.subr.mxu0 0.0
        %438 = vmatpush1.msra.mxu0 0.0
        %439 = vmatprep.subr.mxu0 0.0
        %440 = vmatpush1.msra.mxu0 0.0
        %441 = vmatprep.subr.mxu0 0.0
        %442 = vmatpush1.msra.mxu0 0.0
        %443 = vmatprep.subr.mxu0 0.0
        %444 = vmatpush1.msra.mxu0 0.0
        %445 = vmatprep.subr.mxu0 0.0
        %446 = vmatpush1.msra.mxu0 0.0
        %447 = vmatprep.subr.mxu0 0.0
        %448 = vmatpush1.msra.mxu0 0.0
        %449 = vmatprep.subr.mxu0 0.0
        %450 = vmatpush1.msra.mxu0 0.0
        %451 = vmatprep.subr.mxu0 0.0
        %452 = vmatpush1.msra.mxu0 0.0
        %453 = vmatprep.subr.mxu0 0.0
        %454 = vmatpush1.msra.mxu0 0.0
        %455 = vmatprep.mubr.f32.mxu0 0.0
        %456 = vmatmul.mubr.f32.gmra.mrb[0].mxu0 %v389
        %v457 = vpop.f32.mrb[0].mxu0
        %v458 = vadd.f32 %v385, %v457
        %v459 = vpop.f32.mrb[0].mxu0
        %460 = vdwg.mxu0
        %v461 = vld [vmem:[#allocation5] sm:$0xff]
        %v462 = vld [vmem:[#allocation5 + $0x8] sm:$0xff]
        %v463 = vld [vmem:[#allocation5 + $0x10] sm:$0xff]
        %v464 = vld [vmem:[#allocation5 + $0x18] sm:$0xff]
        %v465 = vld [vmem:[%s373] sm:$0xff]
        %v466 = vld [vmem:[%s373 + $0x8] sm:$0xff]
        %v467 = vld [vmem:[%s373 + $0x10] sm:$0xff]
        %v468 = vld [vmem:[%s373 + $0x18] sm:$0xff]
        %v469 = vld [vmem:[%s373 + $0x20] sm:$0xff]
        %v470 = vld [vmem:[%s373 + $0x28] sm:$0xff]
        %v471 = vld [vmem:[%s373 + $0x30] sm:$0xff]
        %v472 = vld [vmem:[%s373 + $0x38] sm:$0xff]
        %v473 = vld [vmem:[%s5] sm:$0xff]
        %v474 = vld [vmem:[%s5 + $0x8] sm:$0xff]
        %v475 = vld [vmem:[%s5 + $0x10] sm:$0xff]
        %v476 = vld [vmem:[%s5 + $0x18] sm:$0xff]
        %478 = vset.pattern.permute.xlu0 0
        %479 = vperm.xlu0 %478, %v473
        %v480 = vpop.permute.xlu0 %479
        %483 = vset.pattern.permute.xlu0 0
        %484 = vperm.xlu0 %483, %v474
        %v485 = vpop.permute.xlu0 %484
        %488 = vset.pattern.permute.xlu0 0
        %489 = vperm.xlu0 %488, %v475
        %v490 = vpop.permute.xlu0 %489
        %493 = vset.pattern.permute.xlu0 0
        %494 = vperm.xlu0 %493, %v476
        %v495 = vpop.permute.xlu0 %494
        %v498 = vsel %vm387, %v461, 0
        %v501 = vsel %vm387, %v462, 0
        %v504 = vsel %vm387, %v463, 0
        %v507 = vsel %vm387, %v464, 0
        %509 = vmatprep.subr.mxu0 %v466
        %510 = vmatpush1.msra.mxu0 %v465
        %511 = vmatprep.subr.mxu0 %v468
        %512 = vmatpush1.msra.mxu0 %v467
        %513 = vmatprep.subr.mxu0 %v470
        %514 = vmatpush1.msra.mxu0 %v469
        %515 = vmatprep.subr.mxu0 %v472
        %516 = vmatpush1.msra.mxu0 %v471
        %517 = vmatprep.subr.mxu0 0.0
        %518 = vmatpush1.msra.mxu0 0.0
        %519 = vmatprep.subr.mxu0 0.0
        %520 = vmatpush1.msra.mxu0 0.0
        %521 = vmatprep.subr.mxu0 0.0
        %522 = vmatpush1.msra.mxu0 0.0
        %523 = vmatprep.subr.mxu0 0.0
        %524 = vmatpush1.msra.mxu0 0.0
        %525 = vmatprep.subr.mxu0 0.0
        %526 = vmatpush1.msra.mxu0 0.0
        %527 = vmatprep.subr.mxu0 0.0
        %528 = vmatpush1.msra.mxu0 0.0
        %529 = vmatprep.subr.mxu0 0.0
        %530 = vmatpush1.msra.mxu0 0.0
        %531 = vmatprep.subr.mxu0 0.0
        %532 = vmatpush1.msra.mxu0 0.0
        %533 = vmatprep.subr.mxu0 0.0
        %534 = vmatpush1.msra.mxu0 0.0
        %535 = vmatprep.subr.mxu0 0.0
        %536 = vmatpush1.msra.mxu0 0.0
        %537 = vmatprep.subr.mxu0 0.0
        %538 = vmatpush1.msra.mxu0 0.0
        %539 = vmatprep.subr.mxu0 0.0
        %540 = vmatpush1.msra.mxu0 0.0
        %541 = vmatprep.subr.mxu0 0.0
        %542 = vmatpush1.msra.mxu0 0.0
        %543 = vmatprep.subr.mxu0 0.0
        %544 = vmatpush1.msra.mxu0 0.0
        %545 = vmatprep.subr.mxu0 0.0
        %546 = vmatpush1.msra.mxu0 0.0
        %547 = vmatprep.subr.mxu0 0.0
        %548 = vmatpush1.msra.mxu0 0.0
        %549 = vmatprep.subr.mxu0 0.0
        %550 = vmatpush1.msra.mxu0 0.0
        %551 = vmatprep.subr.mxu0 0.0
        %552 = vmatpush1.msra.mxu0 0.0
        %553 = vmatprep.subr.mxu0 0.0
        %554 = vmatpush1.msra.mxu0 0.0
        %555 = vmatprep.subr.mxu0 0.0
        %556 = vmatpush1.msra.mxu0 0.0
        %557 = vmatprep.subr.mxu0 0.0
        %558 = vmatpush1.msra.mxu0 0.0
        %559 = vmatprep.subr.mxu0 0.0
        %560 = vmatpush1.msra.mxu0 0.0
        %561 = vmatprep.subr.mxu0 0.0
        %562 = vmatpush1.msra.mxu0 0.0
        %563 = vmatprep.subr.mxu0 0.0
        %564 = vmatpush1.msra.mxu0 0.0
        %565 = vmatprep.subr.mxu0 0.0
        %566 = vmatpush1.msra.mxu0 0.0
        %567 = vmatprep.subr.mxu0 0.0
        %568 = vmatpush1.msra.mxu0 0.0
        %569 = vmatprep.subr.mxu0 0.0
        %570 = vmatpush1.msra.mxu0 0.0
        %571 = vmatprep.subr.mxu0 0.0
        %572 = vmatpush1.msra.mxu0 0.0
        %573 = vmatprep.mubr.f32.mxu0 0.0
        %574 = vmatmul.mubr.f32.gmra.mrb[0].mxu0 %v498
        %v575 = vpop.f32.mrb[0].mxu0
        %v576 = vadd.f32 %v480, %v575
        %v577 = vpop.f32.mrb[0].mxu0
        %v578 = vadd.f32 %v480, %v577
        %579 = vmatprep.mubr.f32.mxu0 0.0
        %580 = vmatmul.mubr.f32.gmra.mrb[0].mxu0 %v501
        %v581 = vpop.f32.mrb[0].mxu0
        %v582 = vadd.f32 %v485, %v581
        %v583 = vpop.f32.mrb[0].mxu0
        %v584 = vadd.f32 %v485, %v583
        %585 = vmatprep.mubr.f32.mxu0 0.0
        %586 = vmatmul.mubr.f32.gmra.mrb[0].mxu0 %v504
        %v587 = vpop.f32.mrb[0].mxu0
        %v588 = vadd.f32 %v490, %v587
        %v589 = vpop.f32.mrb[0].mxu0
        %v590 = vadd.f32 %v490, %v589
        %591 = vmatprep.mubr.f32.mxu0 0.0
        %592 = vmatmul.mubr.f32.gmra.mrb[0].mxu0 %v507
        %v593 = vpop.f32.mrb[0].mxu0
        %v594 = vadd.f32 %v495, %v593
        %v595 = vpop.f32.mrb[0].mxu0
        %v596 = vadd.f32 %v495, %v595
        %597 = vdwg.mxu0
        %v598 = vld [vmem:[%s6] sm:$0xff]
        %v599 = vld [vmem:[%s6 + $0x8] sm:$0xff]
        %v600 = vld [vmem:[%s6 + $0x10] sm:$0xff]
        %v601 = vld [vmem:[%s6 + $0x18] sm:$0xff]
        %v602 = vld [vmem:[%s6 + $0x20] sm:$0xff]
        %v603 = vld [vmem:[%s6 + $0x28] sm:$0xff]
        %v604 = vld [vmem:[%s6 + $0x30] sm:$0xff]
        %v605 = vld [vmem:[%s6 + $0x38] sm:$0xff]
        %vm606 = vcmask 64512
        %v608 = vsel %vm606, %v598, 0
        %v611 = vsel %vm606, %v599, 0
        %v614 = vsel %vm606, %v600, 0
        %v617 = vsel %vm606, %v601, 0
        %v620 = vsel %vm606, %v602, 0
        %v623 = vsel %vm606, %v603, 0
        %v626 = vsel %vm606, %v604, 0
        %v629 = vsel %vm606, %v605, 0
        %631 = vmatprep.subr.mxu0 0.0
        %632 = vmatpush1.msra.mxu0 %v458
        %633 = vmatprep.subr.mxu0 0.0
        %634 = vmatpush1.msra.mxu0 0.0
        %635 = vmatprep.subr.mxu0 0.0
        %636 = vmatpush1.msra.mxu0 0.0
        %637 = vmatprep.subr.mxu0 0.0
        %638 = vmatpush1.msra.mxu0 0.0
        %639 = vmatprep.subr.mxu0 0.0
        %640 = vmatpush1.msra.mxu0 0.0
        %641 = vmatprep.subr.mxu0 0.0
        %642 = vmatpush1.msra.mxu0 0.0
        %643 = vmatprep.subr.mxu0 0.0
        %644 = vmatpush1.msra.mxu0 0.0
        %645 = vmatprep.subr.mxu0 0.0
        %646 = vmatpush1.msra.mxu0 0.0
        %647 = vmatprep.subr.mxu0 0.0
        %648 = vmatpush1.msra.mxu0 0.0
        %649 = vmatprep.subr.mxu0 0.0
        %650 = vmatpush1.msra.mxu0 0.0
        %651 = vmatprep.subr.mxu0 0.0
        %652 = vmatpush1.msra.mxu0 0.0
        %653 = vmatprep.subr.mxu0 0.0
        %654 = vmatpush1.msra.mxu0 0.0
        %655 = vmatprep.subr.mxu0 0.0
        %656 = vmatpush1.msra.mxu0 0.0
        %657 = vmatprep.subr.mxu0 0.0
        %658 = vmatpush1.msra.mxu0 0.0
        %659 = vmatprep.subr.mxu0 0.0
        %660 = vmatpush1.msra.mxu0 0.0
        %661 = vmatprep.subr.mxu0 0.0
        %662 = vmatpush1.msra.mxu0 0.0
        %663 = vmatprep.subr.mxu0 0.0
        %664 = vmatpush1.msra.mxu0 0.0
        %665 = vmatprep.subr.mxu0 0.0
        %666 = vmatpush1.msra.mxu0 0.0
        %667 = vmatprep.subr.mxu0 0.0
        %668 = vmatpush1.msra.mxu0 0.0
        %669 = vmatprep.subr.mxu0 0.0
        %670 = vmatpush1.msra.mxu0 0.0
        %671 = vmatprep.subr.mxu0 0.0
        %672 = vmatpush1.msra.mxu0 0.0
        %673 = vmatprep.subr.mxu0 0.0
        %674 = vmatpush1.msra.mxu0 0.0
        %675 = vmatprep.subr.mxu0 0.0
        %676 = vmatpush1.msra.mxu0 0.0
        %677 = vmatprep.subr.mxu0 0.0
        %678 = vmatpush1.msra.mxu0 0.0
        %679 = vmatprep.subr.mxu0 0.0
        %680 = vmatpush1.msra.mxu0 0.0
        %681 = vmatprep.subr.mxu0 0.0
        %682 = vmatpush1.msra.mxu0 0.0
        %683 = vmatprep.subr.mxu0 0.0
        %684 = vmatpush1.msra.mxu0 0.0
        %685 = vmatprep.subr.mxu0 0.0
        %686 = vmatpush1.msra.mxu0 0.0
        %687 = vmatprep.subr.mxu0 0.0
        %688 = vmatpush1.msra.mxu0 0.0
        %689 = vmatprep.subr.mxu0 0.0
        %690 = vmatpush1.msra.mxu0 0.0
        %691 = vmatprep.subr.mxu0 0.0
        %692 = vmatpush1.msra.mxu0 0.0
        %693 = vmatprep.subr.mxu0 0.0
        %694 = vmatpush1.msra.mxu0 0.0
        %695 = vmatprep.mubr.f32.mxu0 0.0
        %696 = vmatmul.mubr.f32.gmra.mrb[0].mxu0 %v608
        %v697 = vpop.f32.mrb[0].mxu0
        %v698 = vadd.f32 0.0, %v697
        %v699 = vpop.f32.mrb[0].mxu0
        %700 = vmatprep.mubr.f32.mxu0 0.0
        %701 = vmatmul.mubr.f32.gmra.mrb[0].mxu0 %v611
        %v702 = vpop.f32.mrb[0].mxu0
        %v703 = vadd.f32 0.0, %v702
        %v704 = vpop.f32.mrb[0].mxu0
        %705 = vmatprep.mubr.f32.mxu0 0.0
        %706 = vmatmul.mubr.f32.gmra.mrb[0].mxu0 %v614
        %v707 = vpop.f32.mrb[0].mxu0
        %v708 = vadd.f32 0.0, %v707
        %v709 = vpop.f32.mrb[0].mxu0
        %710 = vmatprep.mubr.f32.mxu0 0.0
        %711 = vmatmul.mubr.f32.gmra.mrb[0].mxu0 %v617
        %v712 = vpop.f32.mrb[0].mxu0
        %v713 = vadd.f32 0.0, %v712
        %v714 = vpop.f32.mrb[0].mxu0
        %715 = vmatprep.mubr.f32.mxu0 0.0
        %716 = vmatmul.mubr.f32.gmra.mrb[0].mxu0 %v620
        %v717 = vpop.f32.mrb[0].mxu0
        %v718 = vadd.f32 0.0, %v717
        %v719 = vpop.f32.mrb[0].mxu0
        %720 = vmatprep.mubr.f32.mxu0 0.0
        %721 = vmatmul.mubr.f32.gmra.mrb[0].mxu0 %v623
        %v722 = vpop.f32.mrb[0].mxu0
        %v723 = vadd.f32 0.0, %v722
        %v724 = vpop.f32.mrb[0].mxu0
        %725 = vmatprep.mubr.f32.mxu0 0.0
        %726 = vmatmul.mubr.f32.gmra.mrb[0].mxu0 %v626
        %v727 = vpop.f32.mrb[0].mxu0
        %v728 = vadd.f32 0.0, %v727
        %v729 = vpop.f32.mrb[0].mxu0
        %730 = vmatprep.mubr.f32.mxu0 0.0
        %731 = vmatmul.mubr.f32.gmra.mrb[0].mxu0 %v629
        %v732 = vpop.f32.mrb[0].mxu0
        %v733 = vadd.f32 0.0, %v732
        %v734 = vpop.f32.mrb[0].mxu0
        %735 = vdwg.mxu0
        %v736 = vld [vmem:[%s7] sm:$0xff]
        %v737 = vld [vmem:[%s7 + $0x8] sm:$0xff]
        %v738 = vld [vmem:[%s7 + $0x10] sm:$0xff]
        %v739 = vld [vmem:[%s7 + $0x18] sm:$0xff]
        %v740 = vld [vmem:[%s7 + $0x20] sm:$0xff]
        %v741 = vld [vmem:[%s7 + $0x28] sm:$0xff]
        %v742 = vld [vmem:[%s7 + $0x30] sm:$0xff]
        %v743 = vld [vmem:[%s7 + $0x38] sm:$0xff]
        %v744 = vmul.f32 %v698, %v736
        %v745 = vmul.f32 %v703, %v737
        %v746 = vmul.f32 %v708, %v738
        %v747 = vmul.f32 %v713, %v739
        %v748 = vmul.f32 %v718, %v740
        %v749 = vmul.f32 %v723, %v741
        %v750 = vmul.f32 %v728, %v742
        %v751 = vmul.f32 %v733, %v743
        %v753 = vsel %vm387, %v744, 0
        %v756 = vsel %vm387, %v745, 0
        %v759 = vsel %vm387, %v746, 0
        %v762 = vsel %vm387, %v747, 0
        %v765 = vsel %vm387, %v748, 0
        %v768 = vsel %vm387, %v749, 0
        %v771 = vsel %vm387, %v750, 0
        %v774 = vsel %vm387, %v751, 0
        %776 = vmatprep.subr.mxu0 %v578
        %777 = vmatpush1.msra.mxu0 %v576
        %778 = vmatprep.subr.mxu0 %v584
        %779 = vmatpush1.msra.mxu0 %v582
        %780 = vmatprep.subr.mxu0 %v590
        %781 = vmatpush1.msra.mxu0 %v588
        %782 = vmatprep.subr.mxu0 %v596
        %783 = vmatpush1.msra.mxu0 %v594
        %784 = vmatprep.subr.mxu0 0.0
        %785 = vmatpush1.msra.mxu0 0.0
        %786 = vmatprep.subr.mxu0 0.0
        %787 = vmatpush1.msra.mxu0 0.0
        %788 = vmatprep.subr.mxu0 0.0
        %789 = vmatpush1.msra.mxu0 0.0
        %790 = vmatprep.subr.mxu0 0.0
        %791 = vmatpush1.msra.mxu0 0.0
        %792 = vmatprep.subr.mxu0 0.0
        %793 = vmatpush1.msra.mxu0 0.0
        %794 = vmatprep.subr.mxu0 0.0
        %795 = vmatpush1.msra.mxu0 0.0
        %796 = vmatprep.subr.mxu0 0.0
        %797 = vmatpush1.msra.mxu0 0.0
        %798 = vmatprep.subr.mxu0 0.0
        %799 = vmatpush1.msra.mxu0 0.0
        %800 = vmatprep.subr.mxu0 0.0
        %801 = vmatpush1.msra.mxu0 0.0
        %802 = vmatprep.subr.mxu0 0.0
        %803 = vmatpush1.msra.mxu0 0.0
        %804 = vmatprep.subr.mxu0 0.0
        %805 = vmatpush1.msra.mxu0 0.0
        %806 = vmatprep.subr.mxu0 0.0
        %807 = vmatpush1.msra.mxu0 0.0
        %808 = vmatprep.subr.mxu0 0.0
        %809 = vmatpush1.msra.mxu0 0.0
        %810 = vmatprep.subr.mxu0 0.0
        %811 = vmatpush1.msra.mxu0 0.0
        %812 = vmatprep.subr.mxu0 0.0
        %813 = vmatpush1.msra.mxu0 0.0
        %814 = vmatprep.subr.mxu0 0.0
        %815 = vmatpush1.msra.mxu0 0.0
        %816 = vmatprep.subr.mxu0 0.0
        %817 = vmatpush1.msra.mxu0 0.0
        %818 = vmatprep.subr.mxu0 0.0
        %819 = vmatpush1.msra.mxu0 0.0
        %820 = vmatprep.subr.mxu0 0.0
        %821 = vmatpush1.msra.mxu0 0.0
        %822 = vmatprep.subr.mxu0 0.0
        %823 = vmatpush1.msra.mxu0 0.0
        %824 = vmatprep.subr.mxu0 0.0
        %825 = vmatpush1.msra.mxu0 0.0
        %826 = vmatprep.subr.mxu0 0.0
        %827 = vmatpush1.msra.mxu0 0.0
        %828 = vmatprep.subr.mxu0 0.0
        %829 = vmatpush1.msra.mxu0 0.0
        %830 = vmatprep.subr.mxu0 0.0
        %831 = vmatpush1.msra.mxu0 0.0
        %832 = vmatprep.subr.mxu0 0.0
        %833 = vmatpush1.msra.mxu0 0.0
        %834 = vmatprep.subr.mxu0 0.0
        %835 = vmatpush1.msra.mxu0 0.0
        %836 = vmatprep.subr.mxu0 0.0
        %837 = vmatpush1.msra.mxu0 0.0
        %838 = vmatprep.subr.mxu0 0.0
        %839 = vmatpush1.msra.mxu0 0.0
        %840 = vmatprep.mubr.f32.mxu0 0.0
        %841 = vmatmul.mubr.f32.gmra.mrb[0].mxu0 %v753
        %v842 = vpop.f32.mrb[0].mxu0
        %v843 = vadd.f32 0.0, %v842
        %v844 = vpop.f32.mrb[0].mxu0
        %v845 = vadd.f32 0.0, %v844
        %846 = vmatprep.mubr.f32.mxu0 0.0
        %847 = vmatmul.mubr.f32.gmra.mrb[0].mxu0 %v756
        %v848 = vpop.f32.mrb[0].mxu0
        %v849 = vadd.f32 0.0, %v848
        %v850 = vpop.f32.mrb[0].mxu0
        %v851 = vadd.f32 0.0, %v850
        %852 = vmatprep.mubr.f32.mxu0 0.0
        %853 = vmatmul.mubr.f32.gmra.mrb[0].mxu0 %v759
        %v854 = vpop.f32.mrb[0].mxu0
        %v855 = vadd.f32 0.0, %v854
        %v856 = vpop.f32.mrb[0].mxu0
        %v857 = vadd.f32 0.0, %v856
        %858 = vmatprep.mubr.f32.mxu0 0.0
        %859 = vmatmul.mubr.f32.gmra.mrb[0].mxu0 %v762
        %v860 = vpop.f32.mrb[0].mxu0
        %v861 = vadd.f32 0.0, %v860
        %v862 = vpop.f32.mrb[0].mxu0
        %v863 = vadd.f32 0.0, %v862
        %864 = vmatprep.mubr.f32.mxu0 0.0
        %865 = vmatmul.mubr.f32.gmra.mrb[0].mxu0 %v765
        %v866 = vpop.f32.mrb[0].mxu0
        %v867 = vadd.f32 0.0, %v866
        %v868 = vpop.f32.mrb[0].mxu0
        %v869 = vadd.f32 0.0, %v868
        %870 = vmatprep.mubr.f32.mxu0 0.0
        %871 = vmatmul.mubr.f32.gmra.mrb[0].mxu0 %v768
        %v872 = vpop.f32.mrb[0].mxu0
        %v873 = vadd.f32 0.0, %v872
        %v874 = vpop.f32.mrb[0].mxu0
        %v875 = vadd.f32 0.0, %v874
        %876 = vmatprep.mubr.f32.mxu0 0.0
        %877 = vmatmul.mubr.f32.gmra.mrb[0].mxu0 %v771
        %v878 = vpop.f32.mrb[0].mxu0
        %v879 = vadd.f32 0.0, %v878
        %v880 = vpop.f32.mrb[0].mxu0
        %v881 = vadd.f32 0.0, %v880
        %882 = vmatprep.mubr.f32.mxu0 0.0
        %883 = vmatmul.mubr.f32.gmra.mrb[0].mxu0 %v774
        %v884 = vpop.f32.mrb[0].mxu0
        %v885 = vadd.f32 0.0, %v884
        %v886 = vpop.f32.mrb[0].mxu0
        %v887 = vadd.f32 0.0, %v886
        %888 = vdwg.mxu0
        %v889 = vmax.f32 %v843, %v845
        %890 = vmax.xlane.f32.xlu0 %v889
        %v891 = vpop.xlane.xlu0 %890
        %v892 = vrot.slane %v891, 4
        %v893 = vmax.f32 %v891, %v892
        %v894 = vrot.slane %v893, 2
        %v895 = vmax.f32 %v893, %v894
        %v896 = vrot.slane %v895, 1
        %v897 = vmax.f32 %v895, %v896
        %v898 = vsub.f32 %v843, %v897
        %v899 = vsub.f32 %v845, %v897
        %v900 = vmul.f32 %v898, 1.442695
        %v901 = vpow.pop %v900
        %v902 = vmul.f32 %v899, 1.442695
        %v903 = vpow.pop %v902
        %v904 = vadd.f32 %v901, %v903
        %905 = vadd.xlane.f32.xlu0 %v904
        %v906 = vpop.xlane.xlu0 %905
        %v907 = vrot.slane %v906, 4
        %v908 = vadd.f32 %v906, %v907
        %v909 = vrot.slane %v908, 2
        %v910 = vadd.f32 %v908, %v909
        %v911 = vrot.slane %v910, 1
        %v912 = vadd.f32 %v910, %v911
        %v913 = vrcp.pop %v912
        %v914 = vmul.f32 %v912, %v913
        %v915 = vsub.f32 2.0, %v914
        %v916 = vmul.f32 %v913, %v915
        %v917 = vmul.f32 %v901, %v916
        %v918 = vmul.f32 %v903, %v916
        %919 = vst [vmem:[%s361] sm:$0xff] %v917
        %920 = vst [vmem:[%s361 + $0x8] sm:$0xff] %v918
        %v921 = vmax.f32 %v849, %v851
        %922 = vmax.xlane.f32.xlu0 %v921
        %v923 = vpop.xlane.xlu0 %922
        %v924 = vrot.slane %v923, 4
        %v925 = vmax.f32 %v923, %v924
        %v926 = vrot.slane %v925, 2
        %v927 = vmax.f32 %v925, %v926
        %v928 = vrot.slane %v927, 1
        %v929 = vmax.f32 %v927, %v928
        %v930 = vsub.f32 %v849, %v929
        %v931 = vsub.f32 %v851, %v929
        %v932 = vmul.f32 %v930, 1.442695
        %v933 = vpow.pop %v932
        %v934 = vmul.f32 %v931, 1.442695
        %v935 = vpow.pop %v934
        %v936 = vadd.f32 %v933, %v935
        %937 = vadd.xlane.f32.xlu0 %v936
        %v938 = vpop.xlane.xlu0 %937
        %v939 = vrot.slane %v938, 4
        %v940 = vadd.f32 %v938, %v939
        %v941 = vrot.slane %v940, 2
        %v942 = vadd.f32 %v940, %v941
        %v943 = vrot.slane %v942, 1
        %v944 = vadd.f32 %v942, %v943
        %v945 = vrcp.pop %v944
        %v946 = vmul.f32 %v944, %v945
        %v947 = vsub.f32 2.0, %v946
        %v948 = vmul.f32 %v945, %v947
        %v949 = vmul.f32 %v933, %v948
        %v950 = vmul.f32 %v935, %v948
        %951 = vst [vmem:[%s361 + $0x10] sm:$0xff] %v949
        %952 = vst [vmem:[%s361 + $0x18] sm:$0xff] %v950
        %v953 = vmax.f32 %v855, %v857
        %954 = vmax.xlane.f32.xlu0 %v953
        %v955 = vpop.xlane.xlu0 %954
        %v956 = vrot.slane %v955, 4
        %v957 = vmax.f32 %v955, %v956
        %v958 = vrot.slane %v957, 2
        %v959 = vmax.f32 %v957, %v958
        %v960 = vrot.slane %v959, 1
        %v961 = vmax.f32 %v959, %v960
        %v962 = vsub.f32 %v855, %v961
        %v963 = vsub.f32 %v857, %v961
        %v964 = vmul.f32 %v962, 1.442695
        %v965 = vpow.pop %v964
        %v966 = vmul.f32 %v963, 1.442695
        %v967 = vpow.pop %v966
        %v968 = vadd.f32 %v965, %v967
        %969 = vadd.xlane.f32.xlu0 %v968
        %v970 = vpop.xlane.xlu0 %969
        %v971 = vrot.slane %v970, 4
        %v972 = vadd.f32 %v970, %v971
        %v973 = vrot.slane %v972, 2
        %v974 = vadd.f32 %v972, %v973
        %v975 = vrot.slane %v974, 1
        %v976 = vadd.f32 %v974, %v975
        %v977 = vrcp.pop %v976
        %v978 = vmul.f32 %v976, %v977
        %v979 = vsub.f32 2.0, %v978
        %v980 = vmul.f32 %v977, %v979
        %v981 = vmul.f32 %v965, %v980
        %v982 = vmul.f32 %v967, %v980
        %983 = vst [vmem:[%s361 + $0x20] sm:$0xff] %v981
        %984 = vst [vmem:[%s361 + $0x28] sm:$0xff] %v982
        %v985 = vmax.f32 %v861, %v863
        %986 = vmax.xlane.f32.xlu0 %v985
        %v987 = vpop.xlane.xlu0 %986
        %v988 = vrot.slane %v987, 4
        %v989 = vmax.f32 %v987, %v988
        %v990 = vrot.slane %v989, 2
        %v991 = vmax.f32 %v989, %v990
        %v992 = vrot.slane %v991, 1
        %v993 = vmax.f32 %v991, %v992
        %v994 = vsub.f32 %v861, %v993
        %v995 = vsub.f32 %v863, %v993
        %v996 = vmul.f32 %v994, 1.442695
        %v997 = vpow.pop %v996
        %v998 = vmul.f32 %v995, 1.442695
        %v999 = vpow.pop %v998
        %v1000 = vadd.f32 %v997, %v999
        %1001 = vadd.xlane.f32.xlu0 %v1000
        %v1002 = vpop.xlane.xlu0 %1001
        %v1003 = vrot.slane %v1002, 4
        %v1004 = vadd.f32 %v1002, %v1003
        %v1005 = vrot.slane %v1004, 2
        %v1006 = vadd.f32 %v1004, %v1005
        %v1007 = vrot.slane %v1006, 1
        %v1008 = vadd.f32 %v1006, %v1007
        %v1009 = vrcp.pop %v1008
        %v1010 = vmul.f32 %v1008, %v1009
        %v1011 = vsub.f32 2.0, %v1010
        %v1012 = vmul.f32 %v1009, %v1011
        %v1013 = vmul.f32 %v997, %v1012
        %v1014 = vmul.f32 %v999, %v1012
        %1015 = vst [vmem:[%s361 + $0x30] sm:$0xff] %v1013
        %1016 = vst [vmem:[%s361 + $0x38] sm:$0xff] %v1014
        %v1017 = vmax.f32 %v867, %v869
        %1018 = vmax.xlane.f32.xlu0 %v1017
        %v1019 = vpop.xlane.xlu0 %1018
        %v1020 = vrot.slane %v1019, 4
        %v1021 = vmax.f32 %v1019, %v1020
        %v1022 = vrot.slane %v1021, 2
        %v1023 = vmax.f32 %v1021, %v1022
        %v1024 = vrot.slane %v1023, 1
        %v1025 = vmax.f32 %v1023, %v1024
        %v1026 = vsub.f32 %v867, %v1025
        %v1027 = vsub.f32 %v869, %v1025
        %v1028 = vmul.f32 %v1026, 1.442695
        %v1029 = vpow.pop %v1028
        %v1030 = vmul.f32 %v1027, 1.442695
        %v1031 = vpow.pop %v1030
        %v1032 = vadd.f32 %v1029, %v1031
        %1033 = vadd.xlane.f32.xlu0 %v1032
        %v1034 = vpop.xlane.xlu0 %1033
        %v1035 = vrot.slane %v1034, 4
        %v1036 = vadd.f32 %v1034, %v1035
        %v1037 = vrot.slane %v1036, 2
        %v1038 = vadd.f32 %v1036, %v1037
        %v1039 = vrot.slane %v1038, 1
        %v1040 = vadd.f32 %v1038, %v1039
        %v1041 = vrcp.pop %v1040
        %v1042 = vmul.f32 %v1040, %v1041
        %v1043 = vsub.f32 2.0, %v1042
        %v1044 = vmul.f32 %v1041, %v1043
        %v1045 = vmul.f32 %v1029, %v1044
        %v1046 = vmul.f32 %v1031, %v1044
        %1047 = vst [vmem:[%s361 + $0x40] sm:$0xff] %v1045
        %1048 = vst [vmem:[%s361 + $0x48] sm:$0xff] %v1046
        %v1049 = vmax.f32 %v873, %v875
        %1050 = vmax.xlane.f32.xlu0 %v1049
        %v1051 = vpop.xlane.xlu0 %1050
        %v1052 = vrot.slane %v1051, 4
        %v1053 = vmax.f32 %v1051, %v1052
        %v1054 = vrot.slane %v1053, 2
        %v1055 = vmax.f32 %v1053, %v1054
        %v1056 = vrot.slane %v1055, 1
        %v1057 = vmax.f32 %v1055, %v1056
        %v1058 = vsub.f32 %v873, %v1057
        %v1059 = vsub.f32 %v875, %v1057
        %v1060 = vmul.f32 %v1058, 1.442695
        %v1061 = vpow.pop %v1060
        %v1062 = vmul.f32 %v1059, 1.442695
        %v1063 = vpow.pop %v1062
        %v1064 = vadd.f32 %v1061, %v1063
        %1065 = vadd.xlane.f32.xlu0 %v1064
        %v1066 = vpop.xlane.xlu0 %1065
        %v1067 = vrot.slane %v1066, 4
        %v1068 = vadd.f32 %v1066, %v1067
        %v1069 = vrot.slane %v1068, 2
        %v1070 = vadd.f32 %v1068, %v1069
        %v1071 = vrot.slane %v1070, 1
        %v1072 = vadd.f32 %v1070, %v1071
        %v1073 = vrcp.pop %v1072
        %v1074 = vmul.f32 %v1072, %v1073
        %v1075 = vsub.f32 2.0, %v1074
        %v1076 = vmul.f32 %v1073, %v1075
        %v1077 = vmul.f32 %v1061, %v1076
        %v1078 = vmul.f32 %v1063, %v1076
        %1079 = vst [vmem:[%s361 + $0x50] sm:$0xff] %v1077
        %1080 = vst [vmem:[%s361 + $0x58] sm:$0xff] %v1078
        %v1081 = vmax.f32 %v879, %v881
        %1082 = vmax.xlane.f32.xlu0 %v1081
        %v1083 = vpop.xlane.xlu0 %1082
        %v1084 = vrot.slane %v1083, 4
        %v1085 = vmax.f32 %v1083, %v1084
        %v1086 = vrot.slane %v1085, 2
        %v1087 = vmax.f32 %v1085, %v1086
        %v1088 = vrot.slane %v1087, 1
        %v1089 = vmax.f32 %v1087, %v1088
        %v1090 = vsub.f32 %v879, %v1089
        %v1091 = vsub.f32 %v881, %v1089
        %v1092 = vmul.f32 %v1090, 1.442695
        %v1093 = vpow.pop %v1092
        %v1094 = vmul.f32 %v1091, 1.442695
        %v1095 = vpow.pop %v1094
        %v1096 = vadd.f32 %v1093, %v1095
        %1097 = vadd.xlane.f32.xlu0 %v1096
        %v1098 = vpop.xlane.xlu0 %1097
        %v1099 = vrot.slane %v1098, 4
        %v1100 = vadd.f32 %v1098, %v1099
        %v1101 = vrot.slane %v1100, 2
        %v1102 = vadd.f32 %v1100, %v1101
        %v1103 = vrot.slane %v1102, 1
        %v1104 = vadd.f32 %v1102, %v1103
        %v1105 = vrcp.pop %v1104
        %v1106 = vmul.f32 %v1104, %v1105
        %v1107 = vsub.f32 2.0, %v1106
        %v1108 = vmul.f32 %v1105, %v1107
        %v1109 = vmul.f32 %v1093, %v1108
        %v1110 = vmul.f32 %v1095, %v1108
        %1111 = vst [vmem:[%s361 + $0x60] sm:$0xff] %v1109
        %1112 = vst [vmem:[%s361 + $0x68] sm:$0xff] %v1110
        %v1113 = vmax.f32 %v885, %v887
        %1114 = vmax.xlane.f32.xlu0 %v1113
        %v1115 = vpop.xlane.xlu0 %1114
        %v1116 = vrot.slane %v1115, 4
        %v1117 = vmax.f32 %v1115, %v1116
        %v1118 = vrot.slane %v1117, 2
        %v1119 = vmax.f32 %v1117, %v1118
        %v1120 = vrot.slane %v1119, 1
        %v1121 = vmax.f32 %v1119, %v1120
        %v1122 = vsub.f32 %v885, %v1121
        %v1123 = vsub.f32 %v887, %v1121
        %v1124 = vmul.f32 %v1122, 1.442695
        %v1125 = vpow.pop %v1124
        %v1126 = vmul.f32 %v1123, 1.442695
        %v1127 = vpow.pop %v1126
        %v1128 = vadd.f32 %v1125, %v1127
        %1129 = vadd.xlane.f32.xlu0 %v1128
        %v1130 = vpop.xlane.xlu0 %1129
        %v1131 = vrot.slane %v1130, 4
        %v1132 = vadd.f32 %v1130, %v1131
        %v1133 = vrot.slane %v1132, 2
        %v1134 = vadd.f32 %v1132, %v1133
        %v1135 = vrot.slane %v1134, 1
        %v1136 = vadd.f32 %v1134, %v1135
        %v1137 = vrcp.pop %v1136
        %v1138 = vmul.f32 %v1136, %v1137
        %v1139 = vsub.f32 2.0, %v1138
        %v1140 = vmul.f32 %v1137, %v1139
        %v1141 = vmul.f32 %v1125, %v1140
        %v1142 = vmul.f32 %v1127, %v1140
        %1143 = vst [vmem:[%s361 + $0x70] sm:$0xff] %v1141
        %1144 = vst [vmem:[%s361 + $0x78] sm:$0xff] %v1142
        %s1145 = sand.u32 %s226, 1
        %s1146 = scalar_lea.sflag [#allocation4], %s1145
        %s1147 = sand.u32 %s226, 1
        %s1148 = smul.addr %s1147, 128
        %s1149 = scalar_lea.vmem [#allocation7], %s1148
        // Predicated region
        $region61: #{tpu_custom_call.1} parent=51 // pred_check
          %p1150 = pneg %p236
        $region62: #{tpu_custom_call.1} parent=51 // pred_check_branch
          %1152 = sbr.rel (%p1150) target = $region64
        $region63: #{tpu_custom_call.1} parent=51 // pred_region
          %s1153 = smul.u32 8, %s29
          %s1155 = ssub.s32 2048, 2048
          %1156 = vsyncadd %s1146, %s1155
          %s1157 = smul.addr %s1153, 2
          %s1158 = smul.addr %s28, 16
          %s1159 = sadd.s32 %s1157, %s1158
          %s1160 = smul.addr %s1159, 128
          %s1161 = scalar_lea.hbm %s8, %s1160
          %s1162 = sshll.u32 %s1149, 4
          %s1163 = int_to_ptr.vmem [resolvable:$true] %s1162
          %1168 = dma.vmem_to_hbm [thread:$0]  %s1163, 2048, %s1161, %s1146, 256, 256, 16
        $region64: #{tpu_custom_call.1} parent=51 // pred_fallthru
          _
      $region52: #{tpu_custom_call.1} parent=5 // pred_fallthru
        _
      %p1169 = scmp.le.s32.totalorder 2, %s19
      // Predicated region
      $region65: #{tpu_custom_call.1} parent=5 // pred_check
        %p1170 = pneg %p1169
      $region66: #{tpu_custom_call.1} parent=5 // pred_check_branch
        %1172 = sbr.rel (%p1170) target = $region68
      $region67: #{tpu_custom_call.1} parent=5 // pred_region
        %s1173 = ssub.s32 %s19, 2
        // Predicated region
        $region69: #{tpu_custom_call.1} parent=67 // pred_check
          %p1174 = pneg %p242
        $region70: #{tpu_custom_call.1} parent=67 // pred_check_branch
          %1176 = sbr.rel (%p1174) target = $region72
        $region71: #{tpu_custom_call.1} parent=67 // pred_region
          %s1177 = sand.u32 %s227, 1
          %s1178 = scalar_lea.sflag [#allocation4], %s1177
          %s1179 = sand.u32 %s227, 1
          %s1180 = smul.addr %s1179, 128
          %s1181 = scalar_lea.vmem [#allocation7], %s1180
          %1182 = dma.done %s1178, 2048
        $region72: #{tpu_custom_call.1} parent=67 // pred_fallthru
          _
      $region68: #{tpu_custom_call.1} parent=5 // pred_fallthru
        _
    $region6: #{tpu_custom_call.1} parent=1 // loop_footer
      %s23 = sadd.s32 1, %s19
    $region7: #{tpu_custom_call.1} parent=1 // loop_footer_branch
      %18 = sbr.rel target = $region3
    $region8: #{tpu_custom_call.1} parent=1 // loop_exit
      _
    %1183 = vsyncpa [#allocation3], 1
    %s1184 = scalar_lea.sflag [#allocation3], 1
    %1185 = vsyncpa %s1184, 1
    %1186 = vsyncpa [#allocation6], 1
    %1187 = vsyncpa [#allocation4], 1
    %s1188 = scalar_lea.sflag [#allocation4], 1
    %1189 = vsyncpa %s1188, 1

</llo_original>
